<compile_context>
chip_gen: v7x
topology: tpu7x:2x2x1
jax: 0.10.0
libtpu: 0.0.40
codegen_flags: <defaults>
</compile_context>

<pallas_src>
import jax
import jax.numpy as jnp
import numpy as np
from jax.experimental import pallas as pl
from jax.experimental.pallas import tpu as pltpu

# --------------------------- model sizes (small, synthetic) ---------------------------
VOCAB = 100
EMBED = 32          # cfg.embed_size
PROJ = 32           # cfg.proj_size
HID = 32            # cfg.hidden_size
NOUT = 3            # cfg.output_size
PAD_IDX = 1
B = 2
L = 8               # premise length == hypothesis length
S = 2 * L           # stacked (premise ; hypothesis) rows per batch element
ROWS = B * S        # all stacked rows (32)
OUT_LANES = 128     # lane-dense output width (>= NOUT)

# weight-slab entry indices (each entry is a [HID, OUT_LANES] lane-padded tile)
W_P = 0       # projection                         lanes [0:PROJ]
W_QC = 1      # [Wq1 | Wc1a] lane-packed           lanes [0:HID] / [HID:2*HID]
W_Q2 = 2      # attention-MLP layer 2              lanes [0:HID]
W_C1B = 3     # compare layer 1, attended half     lanes [0:HID]
W_C2 = 4      # compare layer 2                    lanes [0:HID]
W_A1A = 5     # aggregate layer 1, premise half    lanes [0:HID]
W_A1B = 6     # aggregate layer 1, hypothesis half lanes [0:HID]
W_A2 = 7      # aggregate layer 2                  lanes [0:HID]
W_O = 8       # output weight (zero-padded)        lanes [0:NOUT]
W_B = 9       # biases: row i, lanes [0:HID]  (bp,bq1,bq2,bc1,bc2,ba1,ba2)
NW_ENTRIES = 10

# aux-slab row layout (lane width = ROWS)
AUX_ATT = 0            # rows [0:ROWS]        additive attention mask (0 / -1e30)
AUX_MSUM = ROWS        # rows [ROWS:ROWS+2B]  block mask for (mask*compared).sum(seq)
AUX_ROWS = ROWS + 8    # padded to a multiple of 8 sublanes


# ----------------------------------- Pallas kernel ------------------------------------
def _decomp_att_kernel(x_ref, aux_ref, w_ref, out_ref):
    f32 = jnp.float32
    relu = lambda v: jnp.maximum(v, 0.0)

    def mm(a, w):
        return jnp.dot(a, w, preferred_element_type=f32)

    def bias(i):
        return w_ref[W_B, i:i + 1, :HID]                       # [1, HID]

    x_e = x_ref[...]                                           # [ROWS, EMBED]

    # projection (+ dropout == identity at inference), fused over batch & prem/hypo
    x = mm(x_e, w_ref[W_P, :, :PROJ]) + bias(0)                # [ROWS, PROJ]

    # lane-packed push: x @ [Wq1 | Wc1a] is ONE MXU matmul.  Lanes 0:HID feed the
    # shared DeepDotAttention MLP; lanes HID:2*HID are held for the compare layer.
    t = mm(x, w_ref[W_QC, :, :2 * HID])                        # [ROWS, 2*HID]
    h = relu(t[:, :HID] + bias(1))
    h = relu(mm(h, w_ref[W_Q2, :, :HID]) + bias(2))            # [ROWS, HID]

    # global cross-attention: one Gram matmul + one block-masked softmax.
    # The additive mask (0 valid / -1e30 invalid) already encodes: same example,
    # opposite side (prem<->hypo), key not PAD.  exp of masked entries underflows to 0.
    scores = jax.lax.dot_general(h, h, (((1,), (1,)), ((), ())),
                                 preferred_element_type=f32)   # [ROWS, ROWS]
    scores = scores + aux_ref[AUX_ATT:AUX_ATT + ROWS, :]
    m = jnp.max(scores, axis=-1, keepdims=True)
    e = jnp.exp(scores - m)
    denom = jnp.sum(e, axis=-1, keepdims=True)
    att_w = e * pl.reciprocal(denom, approx=True)              # divide on the EUP slot
    att = mm(att_w, x)                                         # [ROWS, PROJ]

    # compare layer: the x @ Wc1a half was pre-computed in t's upper lanes
    c = relu(t[:, HID:2 * HID] + mm(att, w_ref[W_C1B, :, :HID]) + bias(3))
    c = relu(mm(c, w_ref[W_C2, :, :HID]) + bias(4))            # [ROWS, HID]

    # mask padded positions + sum over sequence as ONE block-mask matmul
    sums = mm(aux_ref[AUX_MSUM:AUX_MSUM + 2 * B, :], c)        # [2B, HID]
    p_sum = sums[:B]
    h_sum = sums[B:2 * B]

    # aggregate + output layer, fused over batch (concat split as two matmuls)
    agg = relu(mm(p_sum, w_ref[W_A1A, :, :HID]) +
               mm(h_sum, w_ref[W_A1B, :, :HID]) + bias(5))
    agg = relu(mm(agg, w_ref[W_A2, :, :HID]) + bias(6))        # [B, HID]
    out_ref[...] = mm(agg, w_ref[W_O])                         # [B, OUT_LANES] lane-dense


# --------------------------------- wrapper / glue --------------------------------------
def kuma_decomp_att_forward(prem_ids, hypo_ids, params):
    """Forward pass.  prem_ids/hypo_ids: int32 [B, L].  Returns [B, NOUT] f32 scores."""
    f32 = jnp.float32
    pm = (prem_ids != PAD_IDX).astype(f32)                     # [B, L]
    hm = (hypo_ids != PAD_IDX).astype(f32)                     # [B, L]

    # embedding lookup (gather) stays in plain JAX glue.
    # TODO(synk): at real SNLI scale, move the gather in-kernel via scalar-prefetched
    #             token ids + a pl.Element row-gather BlockSpec on the embedding table.
    prem_e = params["embed"][prem_ids].astype(f32)             # [B, L, EMBED]
    hypo_e = params["embed"][hypo_ids].astype(f32)             # [B, L, EMBED]

    # stack (premise ; hypothesis) per example, flatten all examples along sublanes
    x = jnp.concatenate([prem_e, hypo_e], axis=1).reshape(ROWS, EMBED)

    # validity of every stacked row when used as an attention KEY
    key_valid = jnp.concatenate([pm, hm], axis=1).reshape(ROWS)       # [ROWS]

    # additive attention block mask: row r may attend key k iff same example,
    # opposite side, and key is not PAD.  0 where allowed, -1e30 otherwise.
    ridx = jnp.arange(ROWS)
    ex = ridx // S
    side = (ridx % S) // L                                     # 0 = premise, 1 = hypothesis
    allowed = (ex[:, None] == ex[None, :]) \
              & (side[:, None] != side[None, :]) \
              & (key_valid[None, :] > 0.5)
    att_mask = jnp.where(allowed, 0.0, -1e30).astype(f32)      # [ROWS, ROWS]

    # block-mask so that "(mask * compared).sum(seq)" becomes one matmul in-kernel
    msum = jnp.zeros((2 * B, ROWS), f32)
    for bi in range(B):
        msum = msum.at[bi, bi * S:bi * S + L].set(pm[bi])              # premise rows
        msum = msum.at[B + bi, bi * S + L:bi * S + S].set(hm[bi])      # hypothesis rows

    aux = jnp.zeros((AUX_ROWS, ROWS), f32)
    aux = aux.at[AUX_ATT:AUX_ATT + ROWS].set(att_mask)
    aux = aux.at[AUX_MSUM:AUX_MSUM + 2 * B].set(msum)

    # one lane-padded weight + bias slab (3 input DMAs total: x, aux, w_slab)
    w_slab = jnp.zeros((NW_ENTRIES, HID, OUT_LANES), f32)
    w_slab = w_slab.at[W_P, :, :PROJ].set(params["Wp"])
    w_slab = w_slab.at[W_QC, :, :HID].set(params["Wq1"])
    w_slab = w_slab.at[W_QC, :, HID:2 * HID].set(params["Wc1a"])
    w_slab = w_slab.at[W_Q2, :, :HID].set(params["Wq2"])
    w_slab = w_slab.at[W_C1B, :, :HID].set(params["Wc1b"])
    w_slab = w_slab.at[W_C2, :, :HID].set(params["Wc2"])
    w_slab = w_slab.at[W_A1A, :, :HID].set(params["Wa1a"])
    w_slab = w_slab.at[W_A1B, :, :HID].set(params["Wa1b"])
    w_slab = w_slab.at[W_A2, :, :HID].set(params["Wa2"])
    w_slab = w_slab.at[W_O, :, :NOUT].set(params["Wo"])
    for i, name in enumerate(["bp", "bq1", "bq2", "bc1", "bc2", "ba1", "ba2"]):
        w_slab = w_slab.at[W_B, i, :HID].set(params[name][0])

    # single grid step; when B grows this axis becomes a batch-tiled "parallel" axis
    # (for the second TensorCore on v7x) without restructuring the kernel body.
    out = pl.pallas_call(
        _decomp_att_kernel,
        out_shape=jax.ShapeDtypeStruct((B, OUT_LANES), jnp.float32),
        grid=(1,),
        in_specs=[
            pl.BlockSpec((ROWS, EMBED), lambda i: (0, 0)),
            pl.BlockSpec((AUX_ROWS, ROWS), lambda i: (0, 0)),
            pl.BlockSpec((NW_ENTRIES, HID, OUT_LANES), lambda i: (0, 0, 0)),
        ],
        out_specs=pl.BlockSpec((B, OUT_LANES), lambda i: (0, 0)),
        compiler_params=pltpu.CompilerParams(dimension_semantics=("arbitrary",)),
    )(x, aux, w_slab)

    return out[:, :NOUT]


# ------------------------------ deterministic init -------------------------------------
def _xavier(key, shape, fan_in, fan_out):
    bound = float(np.sqrt(6.0 / (fan_in + fan_out)))
    return jax.random.uniform(key, shape, jnp.float32, -bound, bound)


def init_params(key):
    ks = jax.random.split(key, 12)
    p = {}

    # nn.Embedding default: N(0, 1), padding row zeroed (reset_params skips embeddings)
    emb = jax.random.normal(ks[0], (VOCAB, EMBED), jnp.float32)
    p["embed"] = emb.at[PAD_IDX].set(0.0)

    # projection  Linear(EMBED, PROJ)        (weights stored as [in, out], biases zero)
    p["Wp"] = _xavier(ks[1], (EMBED, PROJ), EMBED, PROJ)
    p["bp"] = jnp.zeros((1, PROJ), jnp.float32)

    # DeepDotAttention: one shared MLP  Linear(PROJ,HID)+ReLU, Linear(HID,HID)+ReLU
    p["Wq1"] = _xavier(ks[2], (PROJ, HID), PROJ, HID)
    p["bq1"] = jnp.zeros((1, HID), jnp.float32)
    p["Wq2"] = _xavier(ks[3], (HID, HID), HID, HID)
    p["bq2"] = jnp.zeros((1, HID), jnp.float32)

    # compare layer: Linear(2*PROJ, HID) split into two [PROJ,HID] halves, Linear(HID,HID)
    wc1 = _xavier(ks[4], (2 * PROJ, HID), 2 * PROJ, HID)
    p["Wc1a"], p["Wc1b"] = wc1[:PROJ], wc1[PROJ:]
    p["bc1"] = jnp.zeros((1, HID), jnp.float32)
    p["Wc2"] = _xavier(ks[5], (HID, HID), HID, HID)
    p["bc2"] = jnp.zeros((1, HID), jnp.float32)

    # aggregate layer: Linear(2*HID, HID) split, Linear(HID, HID)
    wa1 = _xavier(ks[6], (2 * HID, HID), 2 * HID, HID)
    p["Wa1a"], p["Wa1b"] = wa1[:HID], wa1[HID:]
    p["ba1"] = jnp.zeros((1, HID), jnp.float32)
    p["Wa2"] = _xavier(ks[7], (HID, HID), HID, HID)
    p["ba2"] = jnp.zeros((1, HID), jnp.float32)

    # output layer: Linear(HID, NOUT, bias=False)
    p["Wo"] = _xavier(ks[8], (HID, NOUT), HID, NOUT)
    return p


# -------------------------------- pure-JAX reference ------------------------------------
def reference_forward(prem_ids, hypo_ids, p):
    relu = lambda t: jnp.maximum(t, 0.0)
    prem_mask = (prem_ids != PAD_IDX)
    hypo_mask = (hypo_ids != PAD_IDX)
    prem = p["embed"][prem_ids] @ p["Wp"] + p["bp"]
    hypo = p["embed"][hypo_ids] @ p["Wp"] + p["bp"]

    attn_mlp = lambda t: relu(relu(t @ p["Wq1"] + p["bq1"]) @ p["Wq2"] + p["bq2"])
    ph, hh = attn_mlp(prem), attn_mlp(hypo)
    sim = jnp.einsum("bpd,bhd->bph", ph, hh)

    def msm(s, m):
        s = jnp.where(m, s, -1e30)
        return jax.nn.softmax(s, axis=-1)

    p2h = msm(sim, hypo_mask[:, None, :])
    h2p = msm(jnp.swapaxes(sim, 1, 2), prem_mask[:, None, :])
    att_h = p2h @ hypo
    att_p = h2p @ prem

    wc1 = jnp.concatenate([p["Wc1a"], p["Wc1b"]], axis=0)
    pc = relu(jnp.concatenate([prem, att_h], -1) @ wc1 + p["bc1"])
    pc = relu(pc @ p["Wc2"] + p["bc2"]) * prem_mask[..., None]
    hc = relu(jnp.concatenate([hypo, att_p], -1) @ wc1 + p["bc1"])
    hc = relu(hc @ p["Wc2"] + p["bc2"]) * hypo_mask[..., None]

    wa1 = jnp.concatenate([p["Wa1a"], p["Wa1b"]], axis=0)
    agg_in = jnp.concatenate([pc.sum(1), hc.sum(1)], axis=-1)
    agg = relu(agg_in @ wa1 + p["ba1"])
    agg = relu(agg @ p["Wa2"] + p["ba2"])
    return agg @ p["Wo"]


# --------------------------------------- main -------------------------------------------
if __name__ == "__main__":
    key = jax.random.PRNGKey(0)
    k_param, k_p, k_h = jax.random.split(key, 3)
    params = init_params(k_param)

    prem_ids = jax.random.randint(k_p, (B, L), 2, VOCAB, dtype=jnp.int32)
    hypo_ids = jax.random.randint(k_h, (B, L), 2, VOCAB, dtype=jnp.int32)
    # introduce some padding to exercise the masks
    prem_ids = prem_ids.at[0, 6:].set(PAD_IDX)
    hypo_ids = hypo_ids.at[1, 5:].set(PAD_IDX)

    scores = kuma_decomp_att_forward(prem_ids, hypo_ids, params)
    scores = jax.block_until_ready(scores)

    ref = reference_forward(prem_ids, hypo_ids, params)
    assert scores.shape == (B, NOUT)
    assert np.allclose(np.asarray(scores), np.asarray(ref), atol=1e-2, rtol=1e-2)
    print("KERNEL_OK")
</pallas_src>

<mosaic_0001>
module attributes {stable_mosaic.version = 11 : i64} {
  func.func @_decomp_att_kernel(%arg0: i32, %arg1: memref<32x32xf32, #tpu.memory_space<vmem>>, %arg2: memref<40x32xf32, #tpu.memory_space<vmem>>, %arg3: memref<10x32x128xf32, #tpu.memory_space<vmem>>, %arg4: memref<2x128xf32, #tpu.memory_space<vmem>>) attributes {dimension_semantics = [#tpu.dimension_semantics<arbitrary>], iteration_bounds = array<i64: 1>, scalar_prefetch = 0 : i64, scratch_operands = 0 : i64, tpu.core_type = #tpu.core_type<tc>, window_params = [{pipeline_mode = #tpu.pipeline_mode<synchronous>, transform_indices = @transform_0, window_bounds = array<i64: 32, 32>}, {pipeline_mode = #tpu.pipeline_mode<synchronous>, transform_indices = @transform_1, window_bounds = array<i64: 40, 32>}, {pipeline_mode = #tpu.pipeline_mode<synchronous>, transform_indices = @transform_2, window_bounds = array<i64: 10, 32, 128>}, {pipeline_mode = #tpu.pipeline_mode<synchronous>, transform_indices = @transform_3, window_bounds = array<i64: 2, 128>}]} {
    %c0 = arith.constant 0 : index
    %c0_0 = arith.constant 0 : index
    %0 = vector.load %arg1[%c0, %c0_0] : memref<32x32xf32, #tpu.memory_space<vmem>>, vector<32x32xf32>
    %c0_1 = arith.constant 0 : index
    %c0_2 = arith.constant 0 : index
    %c0_3 = arith.constant 0 : index
    %1 = vector.load %arg3[%c0_1, %c0_2, %c0_3] : memref<10x32x128xf32, #tpu.memory_space<vmem>>, vector<1x32x32xf32>
    %2 = vector.shape_cast %1 : vector<1x32x32xf32> to vector<32x32xf32>
    %cst = arith.constant dense<0.000000e+00> : vector<32x32xf32>
    %3 = tpu.matmul %0, %2, %cst {dimension_numbers = #tpu.dot_dimension_numbers<[1], [0], [0], [1], [0, 0, 1, 1], [], []>} : vector<32x32xf32>, vector<32x32xf32>, vector<32x32xf32> -> vector<32x32xf32>
    %c9 = arith.constant 9 : index
    %c0_4 = arith.constant 0 : index
    %c0_5 = arith.constant 0 : index
    %4 = vector.load %arg3[%c9, %c0_4, %c0_5] : memref<10x32x128xf32, #tpu.memory_space<vmem>>, vector<1x1x32xf32>
    %5 = vector.shape_cast %4 : vector<1x1x32xf32> to vector<1x32xf32>
    %6 = vector.broadcast %5 : vector<1x32xf32> to vector<32x32xf32>
    %7 = arith.addf %3, %6 : vector<32x32xf32>
    %c1 = arith.constant 1 : index
    %c0_6 = arith.constant 0 : index
    %c0_7 = arith.constant 0 : index
    %8 = vector.load %arg3[%c1, %c0_6, %c0_7] : memref<10x32x128xf32, #tpu.memory_space<vmem>>, vector<1x32x64xf32>
    %9 = vector.shape_cast %8 : vector<1x32x64xf32> to vector<32x64xf32>
    %cst_8 = arith.constant dense<0.000000e+00> : vector<32x64xf32>
    %10 = tpu.matmul %7, %9, %cst_8 {dimension_numbers = #tpu.dot_dimension_numbers<[1], [0], [0], [1], [0, 0, 1, 1], [], []>} : vector<32x32xf32>, vector<32x64xf32>, vector<32x64xf32> -> vector<32x64xf32>
    %11 = vector.extract_strided_slice %10 {offsets = [0, 0], sizes = [32, 32], strides = [1, 1]} : vector<32x64xf32> to vector<32x32xf32>
    %c9_9 = arith.constant 9 : index
    %c1_10 = arith.constant 1 : index
    %c0_11 = arith.constant 0 : index
    %12 = vector.load %arg3[%c9_9, %c1_10, %c0_11] : memref<10x32x128xf32, #tpu.memory_space<vmem>>, vector<1x1x32xf32>
    %13 = vector.shape_cast %12 : vector<1x1x32xf32> to vector<1x32xf32>
    %14 = vector.broadcast %13 : vector<1x32xf32> to vector<32x32xf32>
    %15 = arith.addf %11, %14 : vector<32x32xf32>
    %cst_12 = arith.constant 0.000000e+00 : f32
    %16 = vector.broadcast %cst_12 : f32 to vector<32x32xf32>
    %17 = arith.maximumf %15, %16 : vector<32x32xf32>
    %c2 = arith.constant 2 : index
    %c0_13 = arith.constant 0 : index
    %c0_14 = arith.constant 0 : index
    %18 = vector.load %arg3[%c2, %c0_13, %c0_14] : memref<10x32x128xf32, #tpu.memory_space<vmem>>, vector<1x32x32xf32>
    %19 = vector.shape_cast %18 : vector<1x32x32xf32> to vector<32x32xf32>
    %cst_15 = arith.constant dense<0.000000e+00> : vector<32x32xf32>
    %20 = tpu.matmul %17, %19, %cst_15 {dimension_numbers = #tpu.dot_dimension_numbers<[1], [0], [0], [1], [0, 0, 1, 1], [], []>} : vector<32x32xf32>, vector<32x32xf32>, vector<32x32xf32> -> vector<32x32xf32>
    %c9_16 = arith.constant 9 : index
    %c2_17 = arith.constant 2 : index
    %c0_18 = arith.constant 0 : index
    %21 = vector.load %arg3[%c9_16, %c2_17, %c0_18] : memref<10x32x128xf32, #tpu.memory_space<vmem>>, vector<1x1x32xf32>
    %22 = vector.shape_cast %21 : vector<1x1x32xf32> to vector<1x32xf32>
    %23 = vector.broadcast %22 : vector<1x32xf32> to vector<32x32xf32>
    %24 = arith.addf %20, %23 : vector<32x32xf32>
    %cst_19 = arith.constant 0.000000e+00 : f32
    %25 = vector.broadcast %cst_19 : f32 to vector<32x32xf32>
    %26 = arith.maximumf %24, %25 : vector<32x32xf32>
    %cst_20 = arith.constant dense<0.000000e+00> : vector<32x32xf32>
    %27 = tpu.matmul %26, %26, %cst_20 {dimension_numbers = #tpu.dot_dimension_numbers<[1], [1], [0], [0], [0, 0, 1, 0], [], []>} : vector<32x32xf32>, vector<32x32xf32>, vector<32x32xf32> -> vector<32x32xf32>
    %c0_21 = arith.constant 0 : index
    %c0_22 = arith.constant 0 : index
    %28 = vector.load %arg2[%c0_21, %c0_22] : memref<40x32xf32, #tpu.memory_space<vmem>>, vector<32x32xf32>
    %29 = arith.addf %27, %28 : vector<32x32xf32>
    %cst_23 = arith.constant dense<0xFF800000> : vector<32xf32>
    %30 = vector.multi_reduction <maximumf>, %29, %cst_23 [1] : vector<32x32xf32> to vector<32xf32>
    %31 = vector.shape_cast %30 : vector<32xf32> to vector<32x1xf32>
    %32 = vector.broadcast %31 : vector<32x1xf32> to vector<32x32xf32>
    %33 = arith.subf %29, %32 : vector<32x32xf32>
    %34 = math.exp %33 : vector<32x32xf32>
    %cst_24 = arith.constant dense<0.000000e+00> : vector<32xf32>
    %35 = vector.multi_reduction <add>, %34, %cst_24 [1] : vector<32x32xf32> to vector<32xf32>
    %36 = vector.shape_cast %35 : vector<32xf32> to vector<32x1xf32>
    %37 = tpu.reciprocal %36 {approx = true} : vector<32x1xf32> -> vector<32x1xf32>
    %38 = vector.broadcast %37 : vector<32x1xf32> to vector<32x32xf32>
    %39 = arith.mulf %34, %38 : vector<32x32xf32>
    %cst_25 = arith.constant dense<0.000000e+00> : vector<32x32xf32>
    %40 = tpu.matmul %39, %7, %cst_25 {dimension_numbers = #tpu.dot_dimension_numbers<[1], [0], [0], [1], [0, 0, 1, 1], [], []>} : vector<32x32xf32>, vector<32x32xf32>, vector<32x32xf32> -> vector<32x32xf32>
    %41 = vector.extract_strided_slice %10 {offsets = [0, 32], sizes = [32, 32], strides = [1, 1]} : vector<32x64xf32> to vector<32x32xf32>
    %c3 = arith.constant 3 : index
    %c0_26 = arith.constant 0 : index
    %c0_27 = arith.constant 0 : index
    %42 = vector.load %arg3[%c3, %c0_26, %c0_27] : memref<10x32x128xf32, #tpu.memory_space<vmem>>, vector<1x32x32xf32>
    %43 = vector.shape_cast %42 : vector<1x32x32xf32> to vector<32x32xf32>
    %cst_28 = arith.constant dense<0.000000e+00> : vector<32x32xf32>
    %44 = tpu.matmul %40, %43, %cst_28 {dimension_numbers = #tpu.dot_dimension_numbers<[1], [0], [0], [1], [0, 0, 1, 1], [], []>} : vector<32x32xf32>, vector<32x32xf32>, vector<32x32xf32> -> vector<32x32xf32>
    %45 = arith.addf %41, %44 : vector<32x32xf32>
    %c9_29 = arith.constant 9 : index
    %c3_30 = arith.constant 3 : index
    %c0_31 = arith.constant 0 : index
    %46 = vector.load %arg3[%c9_29, %c3_30, %c0_31] : memref<10x32x128xf32, #tpu.memory_space<vmem>>, vector<1x1x32xf32>
    %47 = vector.shape_cast %46 : vector<1x1x32xf32> to vector<1x32xf32>
    %48 = vector.broadcast %47 : vector<1x32xf32> to vector<32x32xf32>
    %49 = arith.addf %45, %48 : vector<32x32xf32>
    %cst_32 = arith.constant 0.000000e+00 : f32
    %50 = vector.broadcast %cst_32 : f32 to vector<32x32xf32>
    %51 = arith.maximumf %49, %50 : vector<32x32xf32>
    %c4 = arith.constant 4 : index
    %c0_33 = arith.constant 0 : index
    %c0_34 = arith.constant 0 : index
    %52 = vector.load %arg3[%c4, %c0_33, %c0_34] : memref<10x32x128xf32, #tpu.memory_space<vmem>>, vector<1x32x32xf32>
    %53 = vector.shape_cast %52 : vector<1x32x32xf32> to vector<32x32xf32>
    %cst_35 = arith.constant dense<0.000000e+00> : vector<32x32xf32>
    %54 = tpu.matmul %51, %53, %cst_35 {dimension_numbers = #tpu.dot_dimension_numbers<[1], [0], [0], [1], [0, 0, 1, 1], [], []>} : vector<32x32xf32>, vector<32x32xf32>, vector<32x32xf32> -> vector<32x32xf32>
    %c9_36 = arith.constant 9 : index
    %c4_37 = arith.constant 4 : index
    %c0_38 = arith.constant 0 : index
    %55 = vector.load %arg3[%c9_36, %c4_37, %c0_38] : memref<10x32x128xf32, #tpu.memory_space<vmem>>, vector<1x1x32xf32>
    %56 = vector.shape_cast %55 : vector<1x1x32xf32> to vector<1x32xf32>
    %57 = vector.broadcast %56 : vector<1x32xf32> to vector<32x32xf32>
    %58 = arith.addf %54, %57 : vector<32x32xf32>
    %cst_39 = arith.constant 0.000000e+00 : f32
    %59 = vector.broadcast %cst_39 : f32 to vector<32x32xf32>
    %60 = arith.maximumf %58, %59 : vector<32x32xf32>
    %c32 = arith.constant 32 : index
    %c0_40 = arith.constant 0 : index
    %61 = vector.load %arg2[%c32, %c0_40] : memref<40x32xf32, #tpu.memory_space<vmem>>, vector<4x32xf32>
    %cst_41 = arith.constant dense<0.000000e+00> : vector<4x32xf32>
    %62 = tpu.matmul %61, %60, %cst_41 {dimension_numbers = #tpu.dot_dimension_numbers<[1], [0], [0], [1], [0, 0, 1, 1], [], []>} : vector<4x32xf32>, vector<32x32xf32>, vector<4x32xf32> -> vector<4x32xf32>
    %63 = vector.extract_strided_slice %62 {offsets = [0, 0], sizes = [2, 32], strides = [1, 1]} : vector<4x32xf32> to vector<2x32xf32>
    %64 = vector.extract_strided_slice %62 {offsets = [2, 0], sizes = [2, 32], strides = [1, 1]} : vector<4x32xf32> to vector<2x32xf32>
    %c5 = arith.constant 5 : index
    %c0_42 = arith.constant 0 : index
    %c0_43 = arith.constant 0 : index
    %65 = vector.load %arg3[%c5, %c0_42, %c0_43] : memref<10x32x128xf32, #tpu.memory_space<vmem>>, vector<1x32x32xf32>
    %66 = vector.shape_cast %65 : vector<1x32x32xf32> to vector<32x32xf32>
    %cst_44 = arith.constant dense<0.000000e+00> : vector<2x32xf32>
    %67 = tpu.matmul %63, %66, %cst_44 {dimension_numbers = #tpu.dot_dimension_numbers<[1], [0], [0], [1], [0, 0, 1, 1], [], []>} : vector<2x32xf32>, vector<32x32xf32>, vector<2x32xf32> -> vector<2x32xf32>
    %c6 = arith.constant 6 : index
    %c0_45 = arith.constant 0 : index
    %c0_46 = arith.constant 0 : index
    %68 = vector.load %arg3[%c6, %c0_45, %c0_46] : memref<10x32x128xf32, #tpu.memory_space<vmem>>, vector<1x32x32xf32>
    %69 = vector.shape_cast %68 : vector<1x32x32xf32> to vector<32x32xf32>
    %cst_47 = arith.constant dense<0.000000e+00> : vector<2x32xf32>
    %70 = tpu.matmul %64, %69, %cst_47 {dimension_numbers = #tpu.dot_dimension_numbers<[1], [0], [0], [1], [0, 0, 1, 1], [], []>} : vector<2x32xf32>, vector<32x32xf32>, vector<2x32xf32> -> vector<2x32xf32>
    %71 = arith.addf %67, %70 : vector<2x32xf32>
    %c9_48 = arith.constant 9 : index
    %c5_49 = arith.constant 5 : index
    %c0_50 = arith.constant 0 : index
    %72 = vector.load %arg3[%c9_48, %c5_49, %c0_50] : memref<10x32x128xf32, #tpu.memory_space<vmem>>, vector<1x1x32xf32>
    %73 = vector.shape_cast %72 : vector<1x1x32xf32> to vector<1x32xf32>
    %74 = vector.broadcast %73 : vector<1x32xf32> to vector<2x32xf32>
    %75 = arith.addf %71, %74 : vector<2x32xf32>
    %cst_51 = arith.constant 0.000000e+00 : f32
    %76 = vector.broadcast %cst_51 : f32 to vector<2x32xf32>
    %77 = arith.maximumf %75, %76 : vector<2x32xf32>
    %c7 = arith.constant 7 : index
    %c0_52 = arith.constant 0 : index
    %c0_53 = arith.constant 0 : index
    %78 = vector.load %arg3[%c7, %c0_52, %c0_53] : memref<10x32x128xf32, #tpu.memory_space<vmem>>, vector<1x32x32xf32>
    %79 = vector.shape_cast %78 : vector<1x32x32xf32> to vector<32x32xf32>
    %cst_54 = arith.constant dense<0.000000e+00> : vector<2x32xf32>
    %80 = tpu.matmul %77, %79, %cst_54 {dimension_numbers = #tpu.dot_dimension_numbers<[1], [0], [0], [1], [0, 0, 1, 1], [], []>} : vector<2x32xf32>, vector<32x32xf32>, vector<2x32xf32> -> vector<2x32xf32>
    %c9_55 = arith.constant 9 : index
    %c6_56 = arith.constant 6 : index
    %c0_57 = arith.constant 0 : index
    %81 = vector.load %arg3[%c9_55, %c6_56, %c0_57] : memref<10x32x128xf32, #tpu.memory_space<vmem>>, vector<1x1x32xf32>
    %82 = vector.shape_cast %81 : vector<1x1x32xf32> to vector<1x32xf32>
    %83 = vector.broadcast %82 : vector<1x32xf32> to vector<2x32xf32>
    %84 = arith.addf %80, %83 : vector<2x32xf32>
    %cst_58 = arith.constant 0.000000e+00 : f32
    %85 = vector.broadcast %cst_58 : f32 to vector<2x32xf32>
    %86 = arith.maximumf %84, %85 : vector<2x32xf32>
    %c8 = arith.constant 8 : index
    %c0_59 = arith.constant 0 : index
    %c0_60 = arith.constant 0 : index
    %87 = vector.load %arg3[%c8, %c0_59, %c0_60] : memref<10x32x128xf32, #tpu.memory_space<vmem>>, vector<1x32x128xf32>
    %88 = vector.shape_cast %87 : vector<1x32x128xf32> to vector<32x128xf32>
    %cst_61 = arith.constant dense<0.000000e+00> : vector<2x128xf32>
    %89 = tpu.matmul %86, %88, %cst_61 {dimension_numbers = #tpu.dot_dimension_numbers<[1], [0], [0], [1], [0, 0, 1, 1], [], []>} : vector<2x32xf32>, vector<32x128xf32>, vector<2x128xf32> -> vector<2x128xf32>
    %c0_62 = arith.constant 0 : index
    %c0_63 = arith.constant 0 : index
    %90 = vector.load %arg4[%c0_62, %c0_63] : memref<2x128xf32, #tpu.memory_space<vmem>>, vector<2x128xf32>
    tpu.vector_store %arg4[%c0_62, %c0_63], %89 {strides = array<i32>} : memref<2x128xf32, #tpu.memory_space<vmem>>, vector<2x128xf32>,
    return
  }
  func.func @transform_0(%arg0: i32) -> (i32, i32) {
    %c0_i32 = arith.constant 0 : i32
    %c0_i32_0 = arith.constant 0 : i32
    %c0_i32_1 = arith.constant 0 : i32
    return %c0_i32, %c0_i32_0 : i32, i32
  }
  func.func @transform_1(%arg0: i32) -> (i32, i32) {
    %c0_i32 = arith.constant 0 : i32
    %c0_i32_0 = arith.constant 0 : i32
    %c0_i32_1 = arith.constant 0 : i32
    return %c0_i32, %c0_i32_0 : i32, i32
  }
  func.func @transform_2(%arg0: i32) -> (i32, i32, i32) {
    %c0_i32 = arith.constant 0 : i32
    %c0_i32_0 = arith.constant 0 : i32
    %c0_i32_1 = arith.constant 0 : i32
    %c0_i32_2 = arith.constant 0 : i32
    return %c0_i32, %c0_i32_0, %c0_i32_1 : i32, i32, i32
  }
  func.func @transform_3(%arg0: i32) -> (i32, i32) {
    %c0_i32 = arith.constant 0 : i32
    %c0_i32_0 = arith.constant 0 : i32
    %c0_i32_1 = arith.constant 0 : i32
    return %c0_i32, %c0_i32_0 : i32, i32
  }
}

</mosaic_0001>

<llo_original>
// kernel: tpu_custom_call.1
$region0: #{tpu_custom_call.1}
  #allocation0 [shape = 'u32[]', space=smem, size = 0x4, offset = 0x4, fixed_abs, tag = 'smem constant byte address 0x4 - core index']
  #allocation1 [shape = 'u32[144,128]{1,0:T(1,128)}', space=vmem, size = 0x12000, scoped, tag = 'internal scratch']
  %s0 = inlined_call_operand.vmem [shape: f32[32,32], index: 0, kind: input, shape index: {}]
  %s1 = inlined_call_operand.vmem [shape: f32[40,32], index: 1, kind: input, shape index: {}]
  %s2 = inlined_call_operand.hbm [shape: f32[10,32,128], index: 2, kind: input, shape index: {}]
  %s3 = inlined_call_operand.hbm [shape: f32[2,128], index: 3, kind: output, shape index: {}]
  %s4 = sld [smem:[#allocation0]]
  $region26: #{tpu_custom_call.1} parent=0
    _
  %s6 = ssub.s32 1, %s4
  %s7 = scalar_select 0, %s6, %s4
  $region1: #{tpu_custom_call.1} parent=0
    #allocation2 [shape = 'u8[163840]{0}', space=vmem, size = 0x28000, scoped, tag = 'input window, operand 2, single buffered']
    #allocation3 [shape = 's32[1]{0}', space=sflag, size = 0x4, scoped, tag = 'scoped memory for tpu_custom_call.1']
    #allocation4 [shape = 's32[1]{0}', space=sflag, size = 0x4, scoped, tag = 'scoped memory for tpu_custom_call.1']
    #allocation5 [shape = 'u8[1024]{0}', space=vmem, size = 0x400, scoped, tag = 'output window, operand 0, single buffered']
    %8 = vsyncpa [#allocation3], 0
    %9 = vsyncpa [#allocation4], 0
    // Predicated region
    $region2: #{tpu_custom_call.1} parent=1 // pred_check
      _
    $region3: #{tpu_custom_call.1} parent=1 // pred_check_branch
      %11 = sbr.rel (0) target = $region5
    $region4: #{tpu_custom_call.1} parent=1 // pred_region
      _
    $region5: #{tpu_custom_call.1} parent=1 // pred_fallthru
      _
    // Predicated region
    $region6: #{tpu_custom_call.1} parent=1 // pred_check
      _
    $region7: #{tpu_custom_call.1} parent=1 // pred_check_branch
      %13 = sbr.rel (0) target = $region9
    $region8: #{tpu_custom_call.1} parent=1 // pred_region
      _
    $region9: #{tpu_custom_call.1} parent=1 // pred_fallthru
      _
    // Predicated region
    $region10: #{tpu_custom_call.1} parent=1 // pred_check
      _
    $region11: #{tpu_custom_call.1} parent=1 // pred_check_branch
      %15 = sbr.rel (0) target = $region13
    $region12: #{tpu_custom_call.1} parent=1 // pred_region
      %s17 = ssub.s32 5120, 5120
      %18 = vsyncadd [#allocation3], %s17
      %s19 = sshll.u32 [#allocation2], 4
      %s20 = int_to_ptr.vmem [resolvable:$true] %s19
      %25 = dma.hbm_to_vmem [thread:$0]  %s2, 5120, %s20, [#allocation3], 128, 128, 8
    $region13: #{tpu_custom_call.1} parent=1 // pred_fallthru
      _
    // Predicated region
    $region14: #{tpu_custom_call.1} parent=1 // pred_check
      _
    $region15: #{tpu_custom_call.1} parent=1 // pred_check_branch
      %27 = sbr.rel (0) target = $region17
    $region16: #{tpu_custom_call.1} parent=1 // pred_region
      %28 = dma.done [#allocation3], 5120
    $region17: #{tpu_custom_call.1} parent=1 // pred_fallthru
      _
    %v29 = vld [vmem:[%s0] sm:$0xff]
    %v30 = vld [vmem:[%s0 + $0x8] sm:$0xff]
    %v31 = vld [vmem:[%s0 + $0x10] sm:$0xff]
    %v32 = vld [vmem:[%s0 + $0x18] sm:$0xff]
    %v33 = vld [vmem:[#allocation2] sm:$0xff]
    %v34 = vld [vmem:[#allocation2 + $0x8] sm:$0xff]
    %v35 = vld [vmem:[#allocation2 + $0x10] sm:$0xff]
    %v36 = vld [vmem:[#allocation2 + $0x18] sm:$0xff]
    %s37 = scalar_lea.vmem [#allocation2], 288
    %v38 = vld [vmem:[%s37] sm:$0x1]
    %v39 = vlaneseq
    %v40 = vshrl.u32 %v39, 7
    %v41 = vsub.s32 0, %v40
    %v42 = vrot.slane %v38, %v41
    %vm43 = vcmask 261120
    %v45 = vsel %vm43, %v29, 0
    %v48 = vsel %vm43, %v30, 0
    %v51 = vsel %vm43, %v31, 0
    %v54 = vsel %vm43, %v32, 0
    %56 = vmatprep.subr.mxu0 0.0
    %57 = vmatpush1.msra.mxu0 %v33
    %58 = vmatprep.subr.mxu0 0.0
    %59 = vmatpush1.msra.mxu0 %v34
    %60 = vmatprep.subr.mxu0 0.0
    %61 = vmatpush1.msra.mxu0 %v35
    %62 = vmatprep.subr.mxu0 0.0
    %63 = vmatpush1.msra.mxu0 %v36
    %64 = vmatprep.subr.mxu0 0.0
    %65 = vmatpush1.msra.mxu0 0.0
    %66 = vmatprep.subr.mxu0 0.0
    %67 = vmatpush1.msra.mxu0 0.0
    %68 = vmatprep.subr.mxu0 0.0
    %69 = vmatpush1.msra.mxu0 0.0
    %70 = vmatprep.subr.mxu0 0.0
    %71 = vmatpush1.msra.mxu0 0.0
    %72 = vmatprep.subr.mxu0 0.0
    %73 = vmatpush1.msra.mxu0 0.0
    %74 = vmatprep.subr.mxu0 0.0
    %75 = vmatpush1.msra.mxu0 0.0
    %76 = vmatprep.subr.mxu0 0.0
    %77 = vmatpush1.msra.mxu0 0.0
    %78 = vmatprep.subr.mxu0 0.0
    %79 = vmatpush1.msra.mxu0 0.0
    %80 = vmatprep.subr.mxu0 0.0
    %81 = vmatpush1.msra.mxu0 0.0
    %82 = vmatprep.subr.mxu0 0.0
    %83 = vmatpush1.msra.mxu0 0.0
    %84 = vmatprep.subr.mxu0 0.0
    %85 = vmatpush1.msra.mxu0 0.0
    %86 = vmatprep.subr.mxu0 0.0
    %87 = vmatpush1.msra.mxu0 0.0
    %88 = vmatprep.subr.mxu0 0.0
    %89 = vmatpush1.msra.mxu0 0.0
    %90 = vmatprep.subr.mxu0 0.0
    %91 = vmatpush1.msra.mxu0 0.0
    %92 = vmatprep.subr.mxu0 0.0
    %93 = vmatpush1.msra.mxu0 0.0
    %94 = vmatprep.subr.mxu0 0.0
    %95 = vmatpush1.msra.mxu0 0.0
    %96 = vmatprep.subr.mxu0 0.0
    %97 = vmatpush1.msra.mxu0 0.0
    %98 = vmatprep.subr.mxu0 0.0
    %99 = vmatpush1.msra.mxu0 0.0
    %100 = vmatprep.subr.mxu0 0.0
    %101 = vmatpush1.msra.mxu0 0.0
    %102 = vmatprep.subr.mxu0 0.0
    %103 = vmatpush1.msra.mxu0 0.0
    %104 = vmatprep.subr.mxu0 0.0
    %105 = vmatpush1.msra.mxu0 0.0
    %106 = vmatprep.subr.mxu0 0.0
    %107 = vmatpush1.msra.mxu0 0.0
    %108 = vmatprep.subr.mxu0 0.0
    %109 = vmatpush1.msra.mxu0 0.0
    %110 = vmatprep.subr.mxu0 0.0
    %111 = vmatpush1.msra.mxu0 0.0
    %112 = vmatprep.subr.mxu0 0.0
    %113 = vmatpush1.msra.mxu0 0.0
    %114 = vmatprep.subr.mxu0 0.0
    %115 = vmatpush1.msra.mxu0 0.0
    %116 = vmatprep.subr.mxu0 0.0
    %117 = vmatpush1.msra.mxu0 0.0
    %118 = vmatprep.subr.mxu0 0.0
    %119 = vmatpush1.msra.mxu0 0.0
    %120 = vmatprep.mubr.f32.mxu0 0.0
    %121 = vmatmul.mubr.f32.gmra.mrb[0].mxu0 %v45
    %v122 = vpop.f32.mrb[0].mxu0
    %v123 = vadd.f32 %v42, %v122
    %v124 = vpop.f32.mrb[0].mxu0
    %125 = vmatprep.mubr.f32.mxu0 0.0
    %126 = vmatmul.mubr.f32.gmra.mrb[0].mxu0 %v48
    %v127 = vpop.f32.mrb[0].mxu0
    %v128 = vadd.f32 %v42, %v127
    %v129 = vpop.f32.mrb[0].mxu0
    %130 = vmatprep.mubr.f32.mxu0 0.0
    %131 = vmatmul.mubr.f32.gmra.mrb[0].mxu0 %v51
    %v132 = vpop.f32.mrb[0].mxu0
    %v133 = vadd.f32 %v42, %v132
    %v134 = vpop.f32.mrb[0].mxu0
    %135 = vmatprep.mubr.f32.mxu0 0.0
    %136 = vmatmul.mubr.f32.gmra.mrb[0].mxu0 %v54
    %v137 = vpop.f32.mrb[0].mxu0
    %v138 = vadd.f32 %v42, %v137
    %v139 = vpop.f32.mrb[0].mxu0
    %140 = vdwg.mxu0
    %s141 = scalar_lea.vmem [#allocation2], 32
    %v142 = vld [vmem:[%s141] sm:$0xff]
    %v143 = vld [vmem:[%s141 + $0x8] sm:$0xff]
    %v144 = vld [vmem:[%s141 + $0x10] sm:$0xff]
    %v145 = vld [vmem:[%s141 + $0x18] sm:$0xff]
    %v147 = vsel %vm43, %v123, 0
    %v150 = vsel %vm43, %v128, 0
    %v153 = vsel %vm43, %v133, 0
    %v156 = vsel %vm43, %v138, 0
    %158 = vmatprep.subr.mxu0 0.0
    %159 = vmatpush1.msra.mxu0 %v142
    %160 = vmatprep.subr.mxu0 0.0
    %161 = vmatpush1.msra.mxu0 %v143
    %162 = vmatprep.subr.mxu0 0.0
    %163 = vmatpush1.msra.mxu0 %v144
    %164 = vmatprep.subr.mxu0 0.0
    %165 = vmatpush1.msra.mxu0 %v145
    %166 = vmatprep.subr.mxu0 0.0
    %167 = vmatpush1.msra.mxu0 0.0
    %168 = vmatprep.subr.mxu0 0.0
    %169 = vmatpush1.msra.mxu0 0.0
    %170 = vmatprep.subr.mxu0 0.0
    %171 = vmatpush1.msra.mxu0 0.0
    %172 = vmatprep.subr.mxu0 0.0
    %173 = vmatpush1.msra.mxu0 0.0
    %174 = vmatprep.subr.mxu0 0.0
    %175 = vmatpush1.msra.mxu0 0.0
    %176 = vmatprep.subr.mxu0 0.0
    %177 = vmatpush1.msra.mxu0 0.0
    %178 = vmatprep.subr.mxu0 0.0
    %179 = vmatpush1.msra.mxu0 0.0
    %180 = vmatprep.subr.mxu0 0.0
    %181 = vmatpush1.msra.mxu0 0.0
    %182 = vmatprep.subr.mxu0 0.0
    %183 = vmatpush1.msra.mxu0 0.0
    %184 = vmatprep.subr.mxu0 0.0
    %185 = vmatpush1.msra.mxu0 0.0
    %186 = vmatprep.subr.mxu0 0.0
    %187 = vmatpush1.msra.mxu0 0.0
    %188 = vmatprep.subr.mxu0 0.0
    %189 = vmatpush1.msra.mxu0 0.0
    %190 = vmatprep.subr.mxu0 0.0
    %191 = vmatpush1.msra.mxu0 0.0
    %192 = vmatprep.subr.mxu0 0.0
    %193 = vmatpush1.msra.mxu0 0.0
    %194 = vmatprep.subr.mxu0 0.0
    %195 = vmatpush1.msra.mxu0 0.0
    %196 = vmatprep.subr.mxu0 0.0
    %197 = vmatpush1.msra.mxu0 0.0
    %198 = vmatprep.subr.mxu0 0.0
    %199 = vmatpush1.msra.mxu0 0.0
    %200 = vmatprep.subr.mxu0 0.0
    %201 = vmatpush1.msra.mxu0 0.0
    %202 = vmatprep.subr.mxu0 0.0
    %203 = vmatpush1.msra.mxu0 0.0
    %204 = vmatprep.subr.mxu0 0.0
    %205 = vmatpush1.msra.mxu0 0.0
    %206 = vmatprep.subr.mxu0 0.0
    %207 = vmatpush1.msra.mxu0 0.0
    %208 = vmatprep.subr.mxu0 0.0
    %209 = vmatpush1.msra.mxu0 0.0
    %210 = vmatprep.subr.mxu0 0.0
    %211 = vmatpush1.msra.mxu0 0.0
    %212 = vmatprep.subr.mxu0 0.0
    %213 = vmatpush1.msra.mxu0 0.0
    %214 = vmatprep.subr.mxu0 0.0
    %215 = vmatpush1.msra.mxu0 0.0
    %216 = vmatprep.subr.mxu0 0.0
    %217 = vmatpush1.msra.mxu0 0.0
    %218 = vmatprep.subr.mxu0 0.0
    %219 = vmatpush1.msra.mxu0 0.0
    %220 = vmatprep.subr.mxu0 0.0
    %221 = vmatpush1.msra.mxu0 0.0
    %222 = vmatprep.mubr.f32.mxu0 0.0
    %223 = vmatmul.mubr.f32.gmra.mrb[0].mxu0 %v147
    %v224 = vpop.f32.mrb[0].mxu0
    %v225 = vadd.f32 0.0, %v224
    %v226 = vpop.f32.mrb[0].mxu0
    %227 = vmatprep.mubr.f32.mxu0 0.0
    %228 = vmatmul.mubr.f32.gmra.mrb[0].mxu0 %v150
    %v229 = vpop.f32.mrb[0].mxu0
    %v230 = vadd.f32 0.0, %v229
    %v231 = vpop.f32.mrb[0].mxu0
    %232 = vmatprep.mubr.f32.mxu0 0.0
    %233 = vmatmul.mubr.f32.gmra.mrb[0].mxu0 %v153
    %v234 = vpop.f32.mrb[0].mxu0
    %v235 = vadd.f32 0.0, %v234
    %v236 = vpop.f32.mrb[0].mxu0
    %237 = vmatprep.mubr.f32.mxu0 0.0
    %238 = vmatmul.mubr.f32.gmra.mrb[0].mxu0 %v156
    %v239 = vpop.f32.mrb[0].mxu0
    %v240 = vadd.f32 0.0, %v239
    %v241 = vpop.f32.mrb[0].mxu0
    %242 = vdwg.mxu0
    %v243 = vld [vmem:[%s37 + $0x1] sm:$0x1]
    %v244 = vlaneseq
    %v245 = vshrl.u32 %v244, 7
    %v246 = vsub.s32 0, %v245
    %v247 = vrot.slane %v243, %v246
    %v248 = vadd.f32 %v225, %v247
    %v249 = vadd.f32 %v230, %v247
    %v250 = vadd.f32 %v235, %v247
    %v251 = vadd.f32 %v240, %v247
    %v252 = vmax.f32 %v248, 0.0
    %v253 = vmax.f32 %v249, 0.0
    %v254 = vmax.f32 %v250, 0.0
    %v255 = vmax.f32 %v251, 0.0
    %s256 = scalar_lea.vmem [#allocation2], 64
    %v257 = vld [vmem:[%s256] sm:$0xff]
    %v258 = vld [vmem:[%s256 + $0x8] sm:$0xff]
    %v259 = vld [vmem:[%s256 + $0x10] sm:$0xff]
    %v260 = vld [vmem:[%s256 + $0x18] sm:$0xff]
    %v261 = vld [vmem:[%s37 + $0x2] sm:$0x1]
    %v262 = vlaneseq
    %v263 = vshrl.u32 %v262, 7
    %v264 = vsub.s32 0, %v263
    %v265 = vrot.slane %v261, %v264
    %v267 = vsel %vm43, %v252, 0
    %v270 = vsel %vm43, %v253, 0
    %v273 = vsel %vm43, %v254, 0
    %v276 = vsel %vm43, %v255, 0
    %278 = vmatprep.subr.mxu0 0.0
    %279 = vmatpush1.msra.mxu0 %v257
    %280 = vmatprep.subr.mxu0 0.0
    %281 = vmatpush1.msra.mxu0 %v258
    %282 = vmatprep.subr.mxu0 0.0
    %283 = vmatpush1.msra.mxu0 %v259
    %284 = vmatprep.subr.mxu0 0.0
    %285 = vmatpush1.msra.mxu0 %v260
    %286 = vmatprep.subr.mxu0 0.0
    %287 = vmatpush1.msra.mxu0 0.0
    %288 = vmatprep.subr.mxu0 0.0
    %289 = vmatpush1.msra.mxu0 0.0
    %290 = vmatprep.subr.mxu0 0.0
    %291 = vmatpush1.msra.mxu0 0.0
    %292 = vmatprep.subr.mxu0 0.0
    %293 = vmatpush1.msra.mxu0 0.0
    %294 = vmatprep.subr.mxu0 0.0
    %295 = vmatpush1.msra.mxu0 0.0
    %296 = vmatprep.subr.mxu0 0.0
    %297 = vmatpush1.msra.mxu0 0.0
    %298 = vmatprep.subr.mxu0 0.0
    %299 = vmatpush1.msra.mxu0 0.0
    %300 = vmatprep.subr.mxu0 0.0
    %301 = vmatpush1.msra.mxu0 0.0
    %302 = vmatprep.subr.mxu0 0.0
    %303 = vmatpush1.msra.mxu0 0.0
    %304 = vmatprep.subr.mxu0 0.0
    %305 = vmatpush1.msra.mxu0 0.0
    %306 = vmatprep.subr.mxu0 0.0
    %307 = vmatpush1.msra.mxu0 0.0
    %308 = vmatprep.subr.mxu0 0.0
    %309 = vmatpush1.msra.mxu0 0.0
    %310 = vmatprep.subr.mxu0 0.0
    %311 = vmatpush1.msra.mxu0 0.0
    %312 = vmatprep.subr.mxu0 0.0
    %313 = vmatpush1.msra.mxu0 0.0
    %314 = vmatprep.subr.mxu0 0.0
    %315 = vmatpush1.msra.mxu0 0.0
    %316 = vmatprep.subr.mxu0 0.0
    %317 = vmatpush1.msra.mxu0 0.0
    %318 = vmatprep.subr.mxu0 0.0
    %319 = vmatpush1.msra.mxu0 0.0
    %320 = vmatprep.subr.mxu0 0.0
    %321 = vmatpush1.msra.mxu0 0.0
    %322 = vmatprep.subr.mxu0 0.0
    %323 = vmatpush1.msra.mxu0 0.0
    %324 = vmatprep.subr.mxu0 0.0
    %325 = vmatpush1.msra.mxu0 0.0
    %326 = vmatprep.subr.mxu0 0.0
    %327 = vmatpush1.msra.mxu0 0.0
    %328 = vmatprep.subr.mxu0 0.0
    %329 = vmatpush1.msra.mxu0 0.0
    %330 = vmatprep.subr.mxu0 0.0
    %331 = vmatpush1.msra.mxu0 0.0
    %332 = vmatprep.subr.mxu0 0.0
    %333 = vmatpush1.msra.mxu0 0.0
    %334 = vmatprep.subr.mxu0 0.0
    %335 = vmatpush1.msra.mxu0 0.0
    %336 = vmatprep.subr.mxu0 0.0
    %337 = vmatpush1.msra.mxu0 0.0
    %338 = vmatprep.subr.mxu0 0.0
    %339 = vmatpush1.msra.mxu0 0.0
    %340 = vmatprep.subr.mxu0 0.0
    %341 = vmatpush1.msra.mxu0 0.0
    %342 = vmatprep.mubr.f32.mxu0 0.0
    %343 = vmatmul.mubr.f32.gmra.mrb[0].mxu0 %v267
    %v344 = vpop.f32.mrb[0].mxu0
    %v345 = vadd.f32 %v265, %v344
    %v346 = vpop.f32.mrb[0].mxu0
    %347 = vmatprep.mubr.f32.mxu0 0.0
    %348 = vmatmul.mubr.f32.gmra.mrb[0].mxu0 %v270
    %v349 = vpop.f32.mrb[0].mxu0
    %v350 = vadd.f32 %v265, %v349
    %v351 = vpop.f32.mrb[0].mxu0
    %352 = vmatprep.mubr.f32.mxu0 0.0
    %353 = vmatmul.mubr.f32.gmra.mrb[0].mxu0 %v273
    %v354 = vpop.f32.mrb[0].mxu0
    %v355 = vadd.f32 %v265, %v354
    %v356 = vpop.f32.mrb[0].mxu0
    %357 = vmatprep.mubr.f32.mxu0 0.0
    %358 = vmatmul.mubr.f32.gmra.mrb[0].mxu0 %v276
    %v359 = vpop.f32.mrb[0].mxu0
    %v360 = vadd.f32 %v265, %v359
    %v361 = vpop.f32.mrb[0].mxu0
    %362 = vdwg.mxu0
    %v363 = vmax.f32 %v345, 0.0
    %v364 = vmax.f32 %v350, 0.0
    %v365 = vmax.f32 %v355, 0.0
    %v366 = vmax.f32 %v360, 0.0
    %v367 = vld [vmem:[%s1] sm:$0xff]
    %v368 = vld [vmem:[%s1 + $0x8] sm:$0xff]
    %v369 = vld [vmem:[%s1 + $0x10] sm:$0xff]
    %v370 = vld [vmem:[%s1 + $0x18] sm:$0xff]
    %v372 = vsel %vm43, %v363, 0
    %v375 = vsel %vm43, %v364, 0
    %v378 = vsel %vm43, %v365, 0
    %v381 = vsel %vm43, %v366, 0
    %383 = vmatprep.subr.mxu0 0.0
    %384 = vmatpush1.xpose.msra.mxu0 %v372
    %385 = vmatprep.subr.mxu0 0.0
    %386 = vmatpush1.xpose.msra.mxu0 %v375
    %387 = vmatprep.subr.mxu0 0.0
    %388 = vmatpush1.xpose.msra.mxu0 %v378
    %389 = vmatprep.subr.mxu0 0.0
    %390 = vmatpush1.xpose.msra.mxu0 %v381
    %391 = vmatprep.subr.mxu0 0.0
    %392 = vmatpush1.xpose.msra.mxu0 0.0
    %393 = vmatprep.subr.mxu0 0.0
    %394 = vmatpush1.xpose.msra.mxu0 0.0
    %395 = vmatprep.subr.mxu0 0.0
    %396 = vmatpush1.xpose.msra.mxu0 0.0
    %397 = vmatprep.subr.mxu0 0.0
    %398 = vmatpush1.xpose.msra.mxu0 0.0
    %399 = vmatprep.subr.mxu0 0.0
    %400 = vmatpush1.xpose.msra.mxu0 0.0
    %401 = vmatprep.subr.mxu0 0.0
    %402 = vmatpush1.xpose.msra.mxu0 0.0
    %403 = vmatprep.subr.mxu0 0.0
    %404 = vmatpush1.xpose.msra.mxu0 0.0
    %405 = vmatprep.subr.mxu0 0.0
    %406 = vmatpush1.xpose.msra.mxu0 0.0
    %407 = vmatprep.subr.mxu0 0.0
    %408 = vmatpush1.xpose.msra.mxu0 0.0
    %409 = vmatprep.subr.mxu0 0.0
    %410 = vmatpush1.xpose.msra.mxu0 0.0
    %411 = vmatprep.subr.mxu0 0.0
    %412 = vmatpush1.xpose.msra.mxu0 0.0
    %413 = vmatprep.subr.mxu0 0.0
    %414 = vmatpush1.xpose.msra.mxu0 0.0
    %415 = vmatprep.subr.mxu0 0.0
    %416 = vmatpush1.xpose.msra.mxu0 0.0
    %417 = vmatprep.subr.mxu0 0.0
    %418 = vmatpush1.xpose.msra.mxu0 0.0
    %419 = vmatprep.subr.mxu0 0.0
    %420 = vmatpush1.xpose.msra.mxu0 0.0
    %421 = vmatprep.subr.mxu0 0.0
    %422 = vmatpush1.xpose.msra.mxu0 0.0
    %423 = vmatprep.subr.mxu0 0.0
    %424 = vmatpush1.xpose.msra.mxu0 0.0
    %425 = vmatprep.subr.mxu0 0.0
    %426 = vmatpush1.xpose.msra.mxu0 0.0
    %427 = vmatprep.subr.mxu0 0.0
    %428 = vmatpush1.xpose.msra.mxu0 0.0
    %429 = vmatprep.subr.mxu0 0.0
    %430 = vmatpush1.xpose.msra.mxu0 0.0
    %431 = vmatprep.subr.mxu0 0.0
    %432 = vmatpush1.xpose.msra.mxu0 0.0
    %433 = vmatprep.subr.mxu0 0.0
    %434 = vmatpush1.xpose.msra.mxu0 0.0
    %435 = vmatprep.subr.mxu0 0.0
    %436 = vmatpush1.xpose.msra.mxu0 0.0
    %437 = vmatprep.subr.mxu0 0.0
    %438 = vmatpush1.xpose.msra.mxu0 0.0
    %439 = vmatprep.subr.mxu0 0.0
    %440 = vmatpush1.xpose.msra.mxu0 0.0
    %441 = vmatprep.subr.mxu0 0.0
    %442 = vmatpush1.xpose.msra.mxu0 0.0
    %443 = vmatprep.subr.mxu0 0.0
    %444 = vmatpush1.xpose.msra.mxu0 0.0
    %445 = vmatprep.subr.mxu0 0.0
    %446 = vmatpush1.xpose.msra.mxu0 0.0
    %447 = vmatprep.mubr.f32.mxu0 0.0
    %448 = vmatmul.mubr.f32.gmra.mrb[0].mxu0 %v372
    %v449 = vpop.f32.mrb[0].mxu0
    %v450 = vadd.f32 %v367, %v449
    %v451 = vpop.f32.mrb[0].mxu0
    %452 = vmatprep.mubr.f32.mxu0 0.0
    %453 = vmatmul.mubr.f32.gmra.mrb[0].mxu0 %v375
    %v454 = vpop.f32.mrb[0].mxu0
    %v455 = vadd.f32 %v368, %v454
    %v456 = vpop.f32.mrb[0].mxu0
    %457 = vmatprep.mubr.f32.mxu0 0.0
    %458 = vmatmul.mubr.f32.gmra.mrb[0].mxu0 %v378
    %v459 = vpop.f32.mrb[0].mxu0
    %v460 = vadd.f32 %v369, %v459
    %v461 = vpop.f32.mrb[0].mxu0
    %462 = vmatprep.mubr.f32.mxu0 0.0
    %463 = vmatmul.mubr.f32.gmra.mrb[0].mxu0 %v381
    %v464 = vpop.f32.mrb[0].mxu0
    %v465 = vadd.f32 %v370, %v464
    %v466 = vpop.f32.mrb[0].mxu0
    %467 = vdwg.mxu0
    %v468 = vsel %vm43, %v450, -inf
    %469 = vmax.xlane.f32.xlu0 %v468
    %v470 = vpop.xlane.xlu0 %469
    %v471 = vsel %vm43, %v455, -inf
    %472 = vmax.xlane.f32.xlu0 %v471
    %v473 = vpop.xlane.xlu0 %472
    %v474 = vsel %vm43, %v460, -inf
    %475 = vmax.xlane.f32.xlu0 %v474
    %v476 = vpop.xlane.xlu0 %475
    %v477 = vsel %vm43, %v465, -inf
    %478 = vmax.xlane.f32.xlu0 %v477
    %v479 = vpop.xlane.xlu0 %478
    %v480 = vsub.f32 %v450, %v470
    %v481 = vsub.f32 %v455, %v473
    %v482 = vsub.f32 %v460, %v476
    %v483 = vsub.f32 %v465, %v479
    %v484 = vmul.f32 %v480, 1.442695
    %v485 = vpow.pop %v484
    %v486 = vmul.f32 %v481, 1.442695
    %v487 = vpow.pop %v486
    %v488 = vmul.f32 %v482, 1.442695
    %v489 = vpow.pop %v488
    %v490 = vmul.f32 %v483, 1.442695
    %v491 = vpow.pop %v490
    %v492 = vsel %vm43, %v485, 0.0
    %493 = vadd.xlane.f32.xlu0 %v492
    %v494 = vpop.xlane.xlu0 %493
    %v495 = vsel %vm43, %v487, 0.0
    %496 = vadd.xlane.f32.xlu0 %v495
    %v497 = vpop.xlane.xlu0 %496
    %v498 = vsel %vm43, %v489, 0.0
    %499 = vadd.xlane.f32.xlu0 %v498
    %v500 = vpop.xlane.xlu0 %499
    %v501 = vsel %vm43, %v491, 0.0
    %502 = vadd.xlane.f32.xlu0 %v501
    %v503 = vpop.xlane.xlu0 %502
    %v504 = vrcp.pop %v494
    %v505 = vrcp.pop %v497
    %v506 = vrcp.pop %v500
    %v507 = vrcp.pop %v503
    %v508 = vmul.f32 %v485, %v504
    %v509 = vmul.f32 %v487, %v505
    %v510 = vmul.f32 %v489, %v506
    %v511 = vmul.f32 %v491, %v507
    %v513 = vsel %vm43, %v508, 0
    %v516 = vsel %vm43, %v509, 0
    %v519 = vsel %vm43, %v510, 0
    %v522 = vsel %vm43, %v511, 0
    %524 = vmatprep.subr.mxu0 0.0
    %525 = vmatpush1.msra.mxu0 %v123
    %526 = vmatprep.subr.mxu0 0.0
    %527 = vmatpush1.msra.mxu0 %v128
    %528 = vmatprep.subr.mxu0 0.0
    %529 = vmatpush1.msra.mxu0 %v133
    %530 = vmatprep.subr.mxu0 0.0
    %531 = vmatpush1.msra.mxu0 %v138
    %532 = vmatprep.subr.mxu0 0.0
    %533 = vmatpush1.msra.mxu0 0.0
    %534 = vmatprep.subr.mxu0 0.0
    %535 = vmatpush1.msra.mxu0 0.0
    %536 = vmatprep.subr.mxu0 0.0
    %537 = vmatpush1.msra.mxu0 0.0
    %538 = vmatprep.subr.mxu0 0.0
    %539 = vmatpush1.msra.mxu0 0.0
    %540 = vmatprep.subr.mxu0 0.0
    %541 = vmatpush1.msra.mxu0 0.0
    %542 = vmatprep.subr.mxu0 0.0
    %543 = vmatpush1.msra.mxu0 0.0
    %544 = vmatprep.subr.mxu0 0.0
    %545 = vmatpush1.msra.mxu0 0.0
    %546 = vmatprep.subr.mxu0 0.0
    %547 = vmatpush1.msra.mxu0 0.0
    %548 = vmatprep.subr.mxu0 0.0
    %549 = vmatpush1.msra.mxu0 0.0
    %550 = vmatprep.subr.mxu0 0.0
    %551 = vmatpush1.msra.mxu0 0.0
    %552 = vmatprep.subr.mxu0 0.0
    %553 = vmatpush1.msra.mxu0 0.0
    %554 = vmatprep.subr.mxu0 0.0
    %555 = vmatpush1.msra.mxu0 0.0
    %556 = vmatprep.subr.mxu0 0.0
    %557 = vmatpush1.msra.mxu0 0.0
    %558 = vmatprep.subr.mxu0 0.0
    %559 = vmatpush1.msra.mxu0 0.0
    %560 = vmatprep.subr.mxu0 0.0
    %561 = vmatpush1.msra.mxu0 0.0
    %562 = vmatprep.subr.mxu0 0.0
    %563 = vmatpush1.msra.mxu0 0.0
    %564 = vmatprep.subr.mxu0 0.0
    %565 = vmatpush1.msra.mxu0 0.0
    %566 = vmatprep.subr.mxu0 0.0
    %567 = vmatpush1.msra.mxu0 0.0
    %568 = vmatprep.subr.mxu0 0.0
    %569 = vmatpush1.msra.mxu0 0.0
    %570 = vmatprep.subr.mxu0 0.0
    %571 = vmatpush1.msra.mxu0 0.0
    %572 = vmatprep.subr.mxu0 0.0
    %573 = vmatpush1.msra.mxu0 0.0
    %574 = vmatprep.subr.mxu0 0.0
    %575 = vmatpush1.msra.mxu0 0.0
    %576 = vmatprep.subr.mxu0 0.0
    %577 = vmatpush1.msra.mxu0 0.0
    %578 = vmatprep.subr.mxu0 0.0
    %579 = vmatpush1.msra.mxu0 0.0
    %580 = vmatprep.subr.mxu0 0.0
    %581 = vmatpush1.msra.mxu0 0.0
    %582 = vmatprep.subr.mxu0 0.0
    %583 = vmatpush1.msra.mxu0 0.0
    %584 = vmatprep.subr.mxu0 0.0
    %585 = vmatpush1.msra.mxu0 0.0
    %586 = vmatprep.subr.mxu0 0.0
    %587 = vmatpush1.msra.mxu0 0.0
    %588 = vmatprep.mubr.f32.mxu0 0.0
    %589 = vmatmul.mubr.f32.gmra.mrb[0].mxu0 %v513
    %v590 = vpop.f32.mrb[0].mxu0
    %v591 = vadd.f32 0.0, %v590
    %v592 = vpop.f32.mrb[0].mxu0
    %593 = vmatprep.mubr.f32.mxu0 0.0
    %594 = vmatmul.mubr.f32.gmra.mrb[0].mxu0 %v516
    %v595 = vpop.f32.mrb[0].mxu0
    %v596 = vadd.f32 0.0, %v595
    %v597 = vpop.f32.mrb[0].mxu0
    %598 = vmatprep.mubr.f32.mxu0 0.0
    %599 = vmatmul.mubr.f32.gmra.mrb[0].mxu0 %v519
    %v600 = vpop.f32.mrb[0].mxu0
    %v601 = vadd.f32 0.0, %v600
    %v602 = vpop.f32.mrb[0].mxu0
    %603 = vmatprep.mubr.f32.mxu0 0.0
    %604 = vmatmul.mubr.f32.gmra.mrb[0].mxu0 %v522
    %v605 = vpop.f32.mrb[0].mxu0
    %v606 = vadd.f32 0.0, %v605
    %v607 = vpop.f32.mrb[0].mxu0
    %608 = vdwg.mxu0
    %s609 = scalar_lea.vmem [#allocation2], 96
    %v610 = vld [vmem:[%s609] sm:$0xff]
    %v611 = vld [vmem:[%s609 + $0x8] sm:$0xff]
    %v612 = vld [vmem:[%s609 + $0x10] sm:$0xff]
    %v613 = vld [vmem:[%s609 + $0x18] sm:$0xff]
    %v615 = vsel %vm43, %v591, 0
    %v618 = vsel %vm43, %v596, 0
    %v621 = vsel %vm43, %v601, 0
    %v624 = vsel %vm43, %v606, 0
    %626 = vmatprep.subr.mxu0 0.0
    %627 = vmatpush1.msra.mxu0 %v610
    %628 = vmatprep.subr.mxu0 0.0
    %629 = vmatpush1.msra.mxu0 %v611
    %630 = vmatprep.subr.mxu0 0.0
    %631 = vmatpush1.msra.mxu0 %v612
    %632 = vmatprep.subr.mxu0 0.0
    %633 = vmatpush1.msra.mxu0 %v613
    %634 = vmatprep.subr.mxu0 0.0
    %635 = vmatpush1.msra.mxu0 0.0
    %636 = vmatprep.subr.mxu0 0.0
    %637 = vmatpush1.msra.mxu0 0.0
    %638 = vmatprep.subr.mxu0 0.0
    %639 = vmatpush1.msra.mxu0 0.0
    %640 = vmatprep.subr.mxu0 0.0
    %641 = vmatpush1.msra.mxu0 0.0
    %642 = vmatprep.subr.mxu0 0.0
    %643 = vmatpush1.msra.mxu0 0.0
    %644 = vmatprep.subr.mxu0 0.0
    %645 = vmatpush1.msra.mxu0 0.0
    %646 = vmatprep.subr.mxu0 0.0
    %647 = vmatpush1.msra.mxu0 0.0
    %648 = vmatprep.subr.mxu0 0.0
    %649 = vmatpush1.msra.mxu0 0.0
    %650 = vmatprep.subr.mxu0 0.0
    %651 = vmatpush1.msra.mxu0 0.0
    %652 = vmatprep.subr.mxu0 0.0
    %653 = vmatpush1.msra.mxu0 0.0
    %654 = vmatprep.subr.mxu0 0.0
    %655 = vmatpush1.msra.mxu0 0.0
    %656 = vmatprep.subr.mxu0 0.0
    %657 = vmatpush1.msra.mxu0 0.0
    %658 = vmatprep.subr.mxu0 0.0
    %659 = vmatpush1.msra.mxu0 0.0
    %660 = vmatprep.subr.mxu0 0.0
    %661 = vmatpush1.msra.mxu0 0.0
    %662 = vmatprep.subr.mxu0 0.0
    %663 = vmatpush1.msra.mxu0 0.0
    %664 = vmatprep.subr.mxu0 0.0
    %665 = vmatpush1.msra.mxu0 0.0
    %666 = vmatprep.subr.mxu0 0.0
    %667 = vmatpush1.msra.mxu0 0.0
    %668 = vmatprep.subr.mxu0 0.0
    %669 = vmatpush1.msra.mxu0 0.0
    %670 = vmatprep.subr.mxu0 0.0
    %671 = vmatpush1.msra.mxu0 0.0
    %672 = vmatprep.subr.mxu0 0.0
    %673 = vmatpush1.msra.mxu0 0.0
    %674 = vmatprep.subr.mxu0 0.0
    %675 = vmatpush1.msra.mxu0 0.0
    %676 = vmatprep.subr.mxu0 0.0
    %677 = vmatpush1.msra.mxu0 0.0
    %678 = vmatprep.subr.mxu0 0.0
    %679 = vmatpush1.msra.mxu0 0.0
    %680 = vmatprep.subr.mxu0 0.0
    %681 = vmatpush1.msra.mxu0 0.0
    %682 = vmatprep.subr.mxu0 0.0
    %683 = vmatpush1.msra.mxu0 0.0
    %684 = vmatprep.subr.mxu0 0.0
    %685 = vmatpush1.msra.mxu0 0.0
    %686 = vmatprep.subr.mxu0 0.0
    %687 = vmatpush1.msra.mxu0 0.0
    %688 = vmatprep.subr.mxu0 0.0
    %689 = vmatpush1.msra.mxu0 0.0
    %690 = vmatprep.mubr.f32.mxu0 0.0
    %691 = vmatmul.mubr.f32.gmra.mrb[0].mxu0 %v615
    %v692 = vpop.f32.mrb[0].mxu0
    %v693 = vadd.f32 0.0, %v692
    %v694 = vpop.f32.mrb[0].mxu0
    %695 = vmatprep.mubr.f32.mxu0 0.0
    %696 = vmatmul.mubr.f32.gmra.mrb[0].mxu0 %v618
    %v697 = vpop.f32.mrb[0].mxu0
    %v698 = vadd.f32 0.0, %v697
    %v699 = vpop.f32.mrb[0].mxu0
    %700 = vmatprep.mubr.f32.mxu0 0.0
    %701 = vmatmul.mubr.f32.gmra.mrb[0].mxu0 %v621
    %v702 = vpop.f32.mrb[0].mxu0
    %v703 = vadd.f32 0.0, %v702
    %v704 = vpop.f32.mrb[0].mxu0
    %705 = vmatprep.mubr.f32.mxu0 0.0
    %706 = vmatmul.mubr.f32.gmra.mrb[0].mxu0 %v624
    %v707 = vpop.f32.mrb[0].mxu0
    %v708 = vadd.f32 0.0, %v707
    %v709 = vpop.f32.mrb[0].mxu0
    %710 = vdwg.mxu0
    %715 = vrot.lane.b32.xlu0 %v693, 32
    %v716 = vpop.permute.xlu0 %715
    %717 = vrot.lane.b32.xlu0 %v698, 32
    %v718 = vpop.permute.xlu0 %717
    %719 = vrot.lane.b32.xlu0 %v703, 32
    %v720 = vpop.permute.xlu0 %719
    %721 = vrot.lane.b32.xlu0 %v708, 32
    %v722 = vpop.permute.xlu0 %721
    %v727 = vadd.f32 %v225, %v716
    %v728 = vadd.f32 %v230, %v718
    %v729 = vadd.f32 %v235, %v720
    %v730 = vadd.f32 %v240, %v722
    %v731 = vld [vmem:[%s37 + $0x3] sm:$0x1]
    %v732 = vlaneseq
    %v733 = vshrl.u32 %v732, 7
    %v734 = vsub.s32 0, %v733
    %v735 = vrot.slane %v731, %v734
    %737 = vrot.lane.b32.xlu0 %v735, 32
    %v738 = vpop.permute.xlu0 %737
    %v740 = vadd.f32 %v727, %v738
    %v741 = vadd.f32 %v728, %v738
    %v742 = vadd.f32 %v729, %v738
    %v743 = vadd.f32 %v730, %v738
    %v744 = vmax.f32 %v740, 0.0
    %v745 = vmax.f32 %v741, 0.0
    %v746 = vmax.f32 %v742, 0.0
    %v747 = vmax.f32 %v743, 0.0
    %s748 = scalar_lea.vmem [#allocation2], 128
    %v749 = vld [vmem:[%s748] sm:$0xff]
    %v750 = vld [vmem:[%s748 + $0x8] sm:$0xff]
    %v751 = vld [vmem:[%s748 + $0x10] sm:$0xff]
    %v752 = vld [vmem:[%s748 + $0x18] sm:$0xff]
    %v753 = vld [vmem:[%s37 + $0x4] sm:$0x1]
    %v754 = vlaneseq
    %v755 = vshrl.u32 %v754, 7
    %v756 = vsub.s32 0, %v755
    %v757 = vrot.slane %v753, %v756
    %762 = vrot.lane.b32.xlu0 %v744, 96
    %v763 = vpop.permute.xlu0 %762
    %764 = vrot.lane.b32.xlu0 %v745, 96
    %v765 = vpop.permute.xlu0 %764
    %766 = vrot.lane.b32.xlu0 %v746, 96
    %v767 = vpop.permute.xlu0 %766
    %768 = vrot.lane.b32.xlu0 %v747, 96
    %v769 = vpop.permute.xlu0 %768
    %v770 = vsel %vm43, %v763, 0
    %v772 = vsel %vm43, %v765, 0
    %v774 = vsel %vm43, %v767, 0
    %v776 = vsel %vm43, %v769, 0
    %778 = vmatprep.subr.mxu0 0.0
    %779 = vmatpush1.msra.mxu0 %v749
    %780 = vmatprep.subr.mxu0 0.0
    %781 = vmatpush1.msra.mxu0 %v750
    %782 = vmatprep.subr.mxu0 0.0
    %783 = vmatpush1.msra.mxu0 %v751
    %784 = vmatprep.subr.mxu0 0.0
    %785 = vmatpush1.msra.mxu0 %v752
    %786 = vmatprep.subr.mxu0 0.0
    %787 = vmatpush1.msra.mxu0 0.0
    %788 = vmatprep.subr.mxu0 0.0
    %789 = vmatpush1.msra.mxu0 0.0
    %790 = vmatprep.subr.mxu0 0.0
    %791 = vmatpush1.msra.mxu0 0.0
    %792 = vmatprep.subr.mxu0 0.0
    %793 = vmatpush1.msra.mxu0 0.0
    %794 = vmatprep.subr.mxu0 0.0
    %795 = vmatpush1.msra.mxu0 0.0
    %796 = vmatprep.subr.mxu0 0.0
    %797 = vmatpush1.msra.mxu0 0.0
    %798 = vmatprep.subr.mxu0 0.0
    %799 = vmatpush1.msra.mxu0 0.0
    %800 = vmatprep.subr.mxu0 0.0
    %801 = vmatpush1.msra.mxu0 0.0
    %802 = vmatprep.subr.mxu0 0.0
    %803 = vmatpush1.msra.mxu0 0.0
    %804 = vmatprep.subr.mxu0 0.0
    %805 = vmatpush1.msra.mxu0 0.0
    %806 = vmatprep.subr.mxu0 0.0
    %807 = vmatpush1.msra.mxu0 0.0
    %808 = vmatprep.subr.mxu0 0.0
    %809 = vmatpush1.msra.mxu0 0.0
    %810 = vmatprep.subr.mxu0 0.0
    %811 = vmatpush1.msra.mxu0 0.0
    %812 = vmatprep.subr.mxu0 0.0
    %813 = vmatpush1.msra.mxu0 0.0
    %814 = vmatprep.subr.mxu0 0.0
    %815 = vmatpush1.msra.mxu0 0.0
    %816 = vmatprep.subr.mxu0 0.0
    %817 = vmatpush1.msra.mxu0 0.0
    %818 = vmatprep.subr.mxu0 0.0
    %819 = vmatpush1.msra.mxu0 0.0
    %820 = vmatprep.subr.mxu0 0.0
    %821 = vmatpush1.msra.mxu0 0.0
    %822 = vmatprep.subr.mxu0 0.0
    %823 = vmatpush1.msra.mxu0 0.0
    %824 = vmatprep.subr.mxu0 0.0
    %825 = vmatpush1.msra.mxu0 0.0
    %826 = vmatprep.subr.mxu0 0.0
    %827 = vmatpush1.msra.mxu0 0.0
    %828 = vmatprep.subr.mxu0 0.0
    %829 = vmatpush1.msra.mxu0 0.0
    %830 = vmatprep.subr.mxu0 0.0
    %831 = vmatpush1.msra.mxu0 0.0
    %832 = vmatprep.subr.mxu0 0.0
    %833 = vmatpush1.msra.mxu0 0.0
    %834 = vmatprep.subr.mxu0 0.0
    %835 = vmatpush1.msra.mxu0 0.0
    %836 = vmatprep.subr.mxu0 0.0
    %837 = vmatpush1.msra.mxu0 0.0
    %838 = vmatprep.subr.mxu0 0.0
    %839 = vmatpush1.msra.mxu0 0.0
    %840 = vmatprep.subr.mxu0 0.0
    %841 = vmatpush1.msra.mxu0 0.0
    %842 = vmatprep.mubr.f32.mxu0 0.0
    %843 = vmatmul.mubr.f32.gmra.mrb[0].mxu0 %v770
    %v844 = vpop.f32.mrb[0].mxu0
    %v845 = vadd.f32 %v757, %v844
    %v846 = vpop.f32.mrb[0].mxu0
    %847 = vmatprep.mubr.f32.mxu0 0.0
    %848 = vmatmul.mubr.f32.gmra.mrb[0].mxu0 %v772
    %v849 = vpop.f32.mrb[0].mxu0
    %v850 = vadd.f32 %v757, %v849
    %v851 = vpop.f32.mrb[0].mxu0
    %852 = vmatprep.mubr.f32.mxu0 0.0
    %853 = vmatmul.mubr.f32.gmra.mrb[0].mxu0 %v774
    %v854 = vpop.f32.mrb[0].mxu0
    %v855 = vadd.f32 %v757, %v854
    %v856 = vpop.f32.mrb[0].mxu0
    %857 = vmatprep.mubr.f32.mxu0 0.0
    %858 = vmatmul.mubr.f32.gmra.mrb[0].mxu0 %v776
    %v859 = vpop.f32.mrb[0].mxu0
    %v860 = vadd.f32 %v757, %v859
    %v861 = vpop.f32.mrb[0].mxu0
    %862 = vdwg.mxu0
    %v863 = vmax.f32 %v845, 0.0
    %v864 = vmax.f32 %v850, 0.0
    %v865 = vmax.f32 %v855, 0.0
    %v866 = vmax.f32 %v860, 0.0
    %v867 = vld [vmem:[%s1 + $0x20] sm:$0xf]
    %v869 = vsel %vm43, %v867, 0
    %871 = vmatprep.subr.mxu0 0.0
    %872 = vmatpush1.msra.mxu0 %v863
    %873 = vmatprep.subr.mxu0 0.0
    %874 = vmatpush1.msra.mxu0 %v864
    %875 = vmatprep.subr.mxu0 0.0
    %876 = vmatpush1.msra.mxu0 %v865
    %877 = vmatprep.subr.mxu0 0.0
    %878 = vmatpush1.msra.mxu0 %v866
    %879 = vmatprep.subr.mxu0 0.0
    %880 = vmatpush1.msra.mxu0 0.0
    %881 = vmatprep.subr.mxu0 0.0
    %882 = vmatpush1.msra.mxu0 0.0
    %883 = vmatprep.subr.mxu0 0.0
    %884 = vmatpush1.msra.mxu0 0.0
    %885 = vmatprep.subr.mxu0 0.0
    %886 = vmatpush1.msra.mxu0 0.0
    %887 = vmatprep.subr.mxu0 0.0
    %888 = vmatpush1.msra.mxu0 0.0
    %889 = vmatprep.subr.mxu0 0.0
    %890 = vmatpush1.msra.mxu0 0.0
    %891 = vmatprep.subr.mxu0 0.0
    %892 = vmatpush1.msra.mxu0 0.0
    %893 = vmatprep.subr.mxu0 0.0
    %894 = vmatpush1.msra.mxu0 0.0
    %895 = vmatprep.subr.mxu0 0.0
    %896 = vmatpush1.msra.mxu0 0.0
    %897 = vmatprep.subr.mxu0 0.0
    %898 = vmatpush1.msra.mxu0 0.0
    %899 = vmatprep.subr.mxu0 0.0
    %900 = vmatpush1.msra.mxu0 0.0
    %901 = vmatprep.subr.mxu0 0.0
    %902 = vmatpush1.msra.mxu0 0.0
    %903 = vmatprep.subr.mxu0 0.0
    %904 = vmatpush1.msra.mxu0 0.0
    %905 = vmatprep.subr.mxu0 0.0
    %906 = vmatpush1.msra.mxu0 0.0
    %907 = vmatprep.subr.mxu0 0.0
    %908 = vmatpush1.msra.mxu0 0.0
    %909 = vmatprep.subr.mxu0 0.0
    %910 = vmatpush1.msra.mxu0 0.0
    %911 = vmatprep.subr.mxu0 0.0
    %912 = vmatpush1.msra.mxu0 0.0
    %913 = vmatprep.subr.mxu0 0.0
    %914 = vmatpush1.msra.mxu0 0.0
    %915 = vmatprep.subr.mxu0 0.0
    %916 = vmatpush1.msra.mxu0 0.0
    %917 = vmatprep.subr.mxu0 0.0
    %918 = vmatpush1.msra.mxu0 0.0
    %919 = vmatprep.subr.mxu0 0.0
    %920 = vmatpush1.msra.mxu0 0.0
    %921 = vmatprep.subr.mxu0 0.0
    %922 = vmatpush1.msra.mxu0 0.0
    %923 = vmatprep.subr.mxu0 0.0
    %924 = vmatpush1.msra.mxu0 0.0
    %925 = vmatprep.subr.mxu0 0.0
    %926 = vmatpush1.msra.mxu0 0.0
    %927 = vmatprep.subr.mxu0 0.0
    %928 = vmatpush1.msra.mxu0 0.0
    %929 = vmatprep.subr.mxu0 0.0
    %930 = vmatpush1.msra.mxu0 0.0
    %931 = vmatprep.subr.mxu0 0.0
    %932 = vmatpush1.msra.mxu0 0.0
    %933 = vmatprep.subr.mxu0 0.0
    %934 = vmatpush1.msra.mxu0 0.0
    %935 = vmatprep.mubr.f32.mxu0 0.0
    %936 = vmatmul.mubr.f32.gmra.mrb[0].mxu0 %v869
    %v937 = vpop.f32.mrb[0].mxu0
    %v938 = vadd.f32 0.0, %v937
    %v939 = vpop.f32.mrb[0].mxu0
    %940 = vdwg.mxu0
    %s941 = scalar_lea.vmem [#allocation2], 160
    %v942 = vld [vmem:[%s941] sm:$0xff]
    %v943 = vld [vmem:[%s941 + $0x8] sm:$0xff]
    %v944 = vld [vmem:[%s941 + $0x10] sm:$0xff]
    %v945 = vld [vmem:[%s941 + $0x18] sm:$0xff]
    %s946 = scalar_lea.vmem [#allocation2], 192
    %v947 = vld [vmem:[%s946] sm:$0xff]
    %v948 = vld [vmem:[%s946 + $0x8] sm:$0xff]
    %v949 = vld [vmem:[%s946 + $0x10] sm:$0xff]
    %v950 = vld [vmem:[%s946 + $0x18] sm:$0xff]
    %v952 = vrot.slane %v938, 2
    %v953 = vsel %vm43, %v952, 0
    %955 = vmatprep.subr.mxu0 0.0
    %956 = vmatpush1.msra.mxu0 %v947
    %957 = vmatprep.subr.mxu0 0.0
    %958 = vmatpush1.msra.mxu0 %v948
    %959 = vmatprep.subr.mxu0 0.0
    %960 = vmatpush1.msra.mxu0 %v949
    %961 = vmatprep.subr.mxu0 0.0
    %962 = vmatpush1.msra.mxu0 %v950
    %963 = vmatprep.subr.mxu0 0.0
    %964 = vmatpush1.msra.mxu0 0.0
    %965 = vmatprep.subr.mxu0 0.0
    %966 = vmatpush1.msra.mxu0 0.0
    %967 = vmatprep.subr.mxu0 0.0
    %968 = vmatpush1.msra.mxu0 0.0
    %969 = vmatprep.subr.mxu0 0.0
    %970 = vmatpush1.msra.mxu0 0.0
    %971 = vmatprep.subr.mxu0 0.0
    %972 = vmatpush1.msra.mxu0 0.0
    %973 = vmatprep.subr.mxu0 0.0
    %974 = vmatpush1.msra.mxu0 0.0
    %975 = vmatprep.subr.mxu0 0.0
    %976 = vmatpush1.msra.mxu0 0.0
    %977 = vmatprep.subr.mxu0 0.0
    %978 = vmatpush1.msra.mxu0 0.0
    %979 = vmatprep.subr.mxu0 0.0
    %980 = vmatpush1.msra.mxu0 0.0
    %981 = vmatprep.subr.mxu0 0.0
    %982 = vmatpush1.msra.mxu0 0.0
    %983 = vmatprep.subr.mxu0 0.0
    %984 = vmatpush1.msra.mxu0 0.0
    %985 = vmatprep.subr.mxu0 0.0
    %986 = vmatpush1.msra.mxu0 0.0
    %987 = vmatprep.subr.mxu0 0.0
    %988 = vmatpush1.msra.mxu0 0.0
    %989 = vmatprep.subr.mxu0 0.0
    %990 = vmatpush1.msra.mxu0 0.0
    %991 = vmatprep.subr.mxu0 0.0
    %992 = vmatpush1.msra.mxu0 0.0
    %993 = vmatprep.subr.mxu0 0.0
    %994 = vmatpush1.msra.mxu0 0.0
    %995 = vmatprep.subr.mxu0 0.0
    %996 = vmatpush1.msra.mxu0 0.0
    %997 = vmatprep.subr.mxu0 0.0
    %998 = vmatpush1.msra.mxu0 0.0
    %999 = vmatprep.subr.mxu0 0.0
    %1000 = vmatpush1.msra.mxu0 0.0
    %1001 = vmatprep.subr.mxu0 0.0
    %1002 = vmatpush1.msra.mxu0 0.0
    %1003 = vmatprep.subr.mxu0 0.0
    %1004 = vmatpush1.msra.mxu0 0.0
    %1005 = vmatprep.subr.mxu0 0.0
    %1006 = vmatpush1.msra.mxu0 0.0
    %1007 = vmatprep.subr.mxu0 0.0
    %1008 = vmatpush1.msra.mxu0 0.0
    %1009 = vmatprep.subr.mxu0 0.0
    %1010 = vmatpush1.msra.mxu0 0.0
    %1011 = vmatprep.subr.mxu0 0.0
    %1012 = vmatpush1.msra.mxu0 0.0
    %1013 = vmatprep.subr.mxu0 0.0
    %1014 = vmatpush1.msra.mxu0 0.0
    %1015 = vmatprep.subr.mxu0 0.0
    %1016 = vmatpush1.msra.mxu0 0.0
    %1017 = vmatprep.subr.mxu0 0.0
    %1018 = vmatpush1.msra.mxu0 0.0
    %1019 = vmatprep.mubr.f32.mxu0 0.0
    %1020 = vmatmul.mubr.f32.gmra.mrb[0].mxu0 %v953
    %v1021 = vpop.f32.mrb[0].mxu0
    %v1022 = vadd.f32 0.0, %v1021
    %v1023 = vpop.f32.mrb[0].mxu0
    %1024 = vdwg.mxu0
    %v1025 = vsel %vm43, %v938, 0
    %1027 = vmatprep.subr.mxu0 0.0
    %1028 = vmatpush1.msra.mxu0 %v942
    %1029 = vmatprep.subr.mxu0 0.0
    %1030 = vmatpush1.msra.mxu0 %v943
    %1031 = vmatprep.subr.mxu0 0.0
    %1032 = vmatpush1.msra.mxu0 %v944
    %1033 = vmatprep.subr.mxu0 0.0
    %1034 = vmatpush1.msra.mxu0 %v945
    %1035 = vmatprep.subr.mxu0 0.0
    %1036 = vmatpush1.msra.mxu0 0.0
    %1037 = vmatprep.subr.mxu0 0.0
    %1038 = vmatpush1.msra.mxu0 0.0
    %1039 = vmatprep.subr.mxu0 0.0
    %1040 = vmatpush1.msra.mxu0 0.0
    %1041 = vmatprep.subr.mxu0 0.0
    %1042 = vmatpush1.msra.mxu0 0.0
    %1043 = vmatprep.subr.mxu0 0.0
    %1044 = vmatpush1.msra.mxu0 0.0
    %1045 = vmatprep.subr.mxu0 0.0
    %1046 = vmatpush1.msra.mxu0 0.0
    %1047 = vmatprep.subr.mxu0 0.0
    %1048 = vmatpush1.msra.mxu0 0.0
    %1049 = vmatprep.subr.mxu0 0.0
    %1050 = vmatpush1.msra.mxu0 0.0
    %1051 = vmatprep.subr.mxu0 0.0
    %1052 = vmatpush1.msra.mxu0 0.0
    %1053 = vmatprep.subr.mxu0 0.0
    %1054 = vmatpush1.msra.mxu0 0.0
    %1055 = vmatprep.subr.mxu0 0.0
    %1056 = vmatpush1.msra.mxu0 0.0
    %1057 = vmatprep.subr.mxu0 0.0
    %1058 = vmatpush1.msra.mxu0 0.0
    %1059 = vmatprep.subr.mxu0 0.0
    %1060 = vmatpush1.msra.mxu0 0.0
    %1061 = vmatprep.subr.mxu0 0.0
    %1062 = vmatpush1.msra.mxu0 0.0
    %1063 = vmatprep.subr.mxu0 0.0
    %1064 = vmatpush1.msra.mxu0 0.0
    %1065 = vmatprep.subr.mxu0 0.0
    %1066 = vmatpush1.msra.mxu0 0.0
    %1067 = vmatprep.subr.mxu0 0.0
    %1068 = vmatpush1.msra.mxu0 0.0
    %1069 = vmatprep.subr.mxu0 0.0
    %1070 = vmatpush1.msra.mxu0 0.0
    %1071 = vmatprep.subr.mxu0 0.0
    %1072 = vmatpush1.msra.mxu0 0.0
    %1073 = vmatprep.subr.mxu0 0.0
    %1074 = vmatpush1.msra.mxu0 0.0
    %1075 = vmatprep.subr.mxu0 0.0
    %1076 = vmatpush1.msra.mxu0 0.0
    %1077 = vmatprep.subr.mxu0 0.0
    %1078 = vmatpush1.msra.mxu0 0.0
    %1079 = vmatprep.subr.mxu0 0.0
    %1080 = vmatpush1.msra.mxu0 0.0
    %1081 = vmatprep.subr.mxu0 0.0
    %1082 = vmatpush1.msra.mxu0 0.0
    %1083 = vmatprep.subr.mxu0 0.0
    %1084 = vmatpush1.msra.mxu0 0.0
    %1085 = vmatprep.subr.mxu0 0.0
    %1086 = vmatpush1.msra.mxu0 0.0
    %1087 = vmatprep.subr.mxu0 0.0
    %1088 = vmatpush1.msra.mxu0 0.0
    %1089 = vmatprep.subr.mxu0 0.0
    %1090 = vmatpush1.msra.mxu0 0.0
    %1091 = vmatprep.mubr.f32.mxu0 0.0
    %1092 = vmatmul.mubr.f32.gmra.mrb[0].mxu0 %v1025
    %v1093 = vpop.f32.mrb[0].mxu0
    %v1094 = vadd.f32 %v1022, %v1093
    %v1095 = vpop.f32.mrb[0].mxu0
    %1096 = vdwg.mxu0
    %v1097 = vld [vmem:[%s37 + $0x5] sm:$0x1]
    %v1098 = vlaneseq
    %v1099 = vshrl.u32 %v1098, 7
    %v1100 = vsub.s32 0, %v1099
    %v1101 = vrot.slane %v1097, %v1100
    %v1102 = vadd.f32 %v1094, %v1101
    %v1103 = vmax.f32 %v1102, 0.0
    %s1104 = scalar_lea.vmem [#allocation2], 224
    %v1105 = vld [vmem:[%s1104] sm:$0xff]
    %v1106 = vld [vmem:[%s1104 + $0x8] sm:$0xff]
    %v1107 = vld [vmem:[%s1104 + $0x10] sm:$0xff]
    %v1108 = vld [vmem:[%s1104 + $0x18] sm:$0xff]
    %v1109 = vld [vmem:[%s37 + $0x6] sm:$0x1]
    %v1110 = vlaneseq
    %v1111 = vshrl.u32 %v1110, 7
    %v1112 = vsub.s32 0, %v1111
    %v1113 = vrot.slane %v1109, %v1112
    %v1115 = vsel %vm43, %v1103, 0
    %1117 = vmatprep.subr.mxu0 0.0
    %1118 = vmatpush1.msra.mxu0 %v1105
    %1119 = vmatprep.subr.mxu0 0.0
    %1120 = vmatpush1.msra.mxu0 %v1106
    %1121 = vmatprep.subr.mxu0 0.0
    %1122 = vmatpush1.msra.mxu0 %v1107
    %1123 = vmatprep.subr.mxu0 0.0
    %1124 = vmatpush1.msra.mxu0 %v1108
    %1125 = vmatprep.subr.mxu0 0.0
    %1126 = vmatpush1.msra.mxu0 0.0
    %1127 = vmatprep.subr.mxu0 0.0
    %1128 = vmatpush1.msra.mxu0 0.0
    %1129 = vmatprep.subr.mxu0 0.0
    %1130 = vmatpush1.msra.mxu0 0.0
    %1131 = vmatprep.subr.mxu0 0.0
    %1132 = vmatpush1.msra.mxu0 0.0
    %1133 = vmatprep.subr.mxu0 0.0
    %1134 = vmatpush1.msra.mxu0 0.0
    %1135 = vmatprep.subr.mxu0 0.0
    %1136 = vmatpush1.msra.mxu0 0.0
    %1137 = vmatprep.subr.mxu0 0.0
    %1138 = vmatpush1.msra.mxu0 0.0
    %1139 = vmatprep.subr.mxu0 0.0
    %1140 = vmatpush1.msra.mxu0 0.0
    %1141 = vmatprep.subr.mxu0 0.0
    %1142 = vmatpush1.msra.mxu0 0.0
    %1143 = vmatprep.subr.mxu0 0.0
    %1144 = vmatpush1.msra.mxu0 0.0
    %1145 = vmatprep.subr.mxu0 0.0
    %1146 = vmatpush1.msra.mxu0 0.0
    %1147 = vmatprep.subr.mxu0 0.0
    %1148 = vmatpush1.msra.mxu0 0.0
    %1149 = vmatprep.subr.mxu0 0.0
    %1150 = vmatpush1.msra.mxu0 0.0
    %1151 = vmatprep.subr.mxu0 0.0
    %1152 = vmatpush1.msra.mxu0 0.0
    %1153 = vmatprep.subr.mxu0 0.0
    %1154 = vmatpush1.msra.mxu0 0.0
    %1155 = vmatprep.subr.mxu0 0.0
    %1156 = vmatpush1.msra.mxu0 0.0
    %1157 = vmatprep.subr.mxu0 0.0
    %1158 = vmatpush1.msra.mxu0 0.0
    %1159 = vmatprep.subr.mxu0 0.0
    %1160 = vmatpush1.msra.mxu0 0.0
    %1161 = vmatprep.subr.mxu0 0.0
    %1162 = vmatpush1.msra.mxu0 0.0
    %1163 = vmatprep.subr.mxu0 0.0
    %1164 = vmatpush1.msra.mxu0 0.0
    %1165 = vmatprep.subr.mxu0 0.0
    %1166 = vmatpush1.msra.mxu0 0.0
    %1167 = vmatprep.subr.mxu0 0.0
    %1168 = vmatpush1.msra.mxu0 0.0
    %1169 = vmatprep.subr.mxu0 0.0
    %1170 = vmatpush1.msra.mxu0 0.0
    %1171 = vmatprep.subr.mxu0 0.0
    %1172 = vmatpush1.msra.mxu0 0.0
    %1173 = vmatprep.subr.mxu0 0.0
    %1174 = vmatpush1.msra.mxu0 0.0
    %1175 = vmatprep.subr.mxu0 0.0
    %1176 = vmatpush1.msra.mxu0 0.0
    %1177 = vmatprep.subr.mxu0 0.0
    %1178 = vmatpush1.msra.mxu0 0.0
    %1179 = vmatprep.subr.mxu0 0.0
    %1180 = vmatpush1.msra.mxu0 0.0
    %1181 = vmatprep.mubr.f32.mxu0 0.0
    %1182 = vmatmul.mubr.f32.gmra.mrb[0].mxu0 %v1115
    %v1183 = vpop.f32.mrb[0].mxu0
    %v1184 = vadd.f32 %v1113, %v1183
    %v1185 = vpop.f32.mrb[0].mxu0
    %1186 = vdwg.mxu0
    %v1187 = vmax.f32 %v1184, 0.0
    %s1188 = scalar_lea.vmem [#allocation2], 256
    %v1189 = vld [vmem:[%s1188] sm:$0xff]
    %v1190 = vld [vmem:[%s1188 + $0x8] sm:$0xff]
    %v1191 = vld [vmem:[%s1188 + $0x10] sm:$0xff]
    %v1192 = vld [vmem:[%s1188 + $0x18] sm:$0xff]
    %v1194 = vsel %vm43, %v1187, 0
    %1196 = vmatprep.subr.mxu0 0.0
    %1197 = vmatpush1.msra.mxu0 %v1189
    %1198 = vmatprep.subr.mxu0 0.0
    %1199 = vmatpush1.msra.mxu0 %v1190
    %1200 = vmatprep.subr.mxu0 0.0
    %1201 = vmatpush1.msra.mxu0 %v1191
    %1202 = vmatprep.subr.mxu0 0.0
    %1203 = vmatpush1.msra.mxu0 %v1192
    %1204 = vmatprep.subr.mxu0 0.0
    %1205 = vmatpush1.msra.mxu0 0.0
    %1206 = vmatprep.subr.mxu0 0.0
    %1207 = vmatpush1.msra.mxu0 0.0
    %1208 = vmatprep.subr.mxu0 0.0
    %1209 = vmatpush1.msra.mxu0 0.0
    %1210 = vmatprep.subr.mxu0 0.0
    %1211 = vmatpush1.msra.mxu0 0.0
    %1212 = vmatprep.subr.mxu0 0.0
    %1213 = vmatpush1.msra.mxu0 0.0
    %1214 = vmatprep.subr.mxu0 0.0
    %1215 = vmatpush1.msra.mxu0 0.0
    %1216 = vmatprep.subr.mxu0 0.0
    %1217 = vmatpush1.msra.mxu0 0.0
    %1218 = vmatprep.subr.mxu0 0.0
    %1219 = vmatpush1.msra.mxu0 0.0
    %1220 = vmatprep.subr.mxu0 0.0
    %1221 = vmatpush1.msra.mxu0 0.0
    %1222 = vmatprep.subr.mxu0 0.0
    %1223 = vmatpush1.msra.mxu0 0.0
    %1224 = vmatprep.subr.mxu0 0.0
    %1225 = vmatpush1.msra.mxu0 0.0
    %1226 = vmatprep.subr.mxu0 0.0
    %1227 = vmatpush1.msra.mxu0 0.0
    %1228 = vmatprep.subr.mxu0 0.0
    %1229 = vmatpush1.msra.mxu0 0.0
    %1230 = vmatprep.subr.mxu0 0.0
    %1231 = vmatpush1.msra.mxu0 0.0
    %1232 = vmatprep.subr.mxu0 0.0
    %1233 = vmatpush1.msra.mxu0 0.0
    %1234 = vmatprep.subr.mxu0 0.0
    %1235 = vmatpush1.msra.mxu0 0.0
    %1236 = vmatprep.subr.mxu0 0.0
    %1237 = vmatpush1.msra.mxu0 0.0
    %1238 = vmatprep.subr.mxu0 0.0
    %1239 = vmatpush1.msra.mxu0 0.0
    %1240 = vmatprep.subr.mxu0 0.0
    %1241 = vmatpush1.msra.mxu0 0.0
    %1242 = vmatprep.subr.mxu0 0.0
    %1243 = vmatpush1.msra.mxu0 0.0
    %1244 = vmatprep.subr.mxu0 0.0
    %1245 = vmatpush1.msra.mxu0 0.0
    %1246 = vmatprep.subr.mxu0 0.0
    %1247 = vmatpush1.msra.mxu0 0.0
    %1248 = vmatprep.subr.mxu0 0.0
    %1249 = vmatpush1.msra.mxu0 0.0
    %1250 = vmatprep.subr.mxu0 0.0
    %1251 = vmatpush1.msra.mxu0 0.0
    %1252 = vmatprep.subr.mxu0 0.0
    %1253 = vmatpush1.msra.mxu0 0.0
    %1254 = vmatprep.subr.mxu0 0.0
    %1255 = vmatpush1.msra.mxu0 0.0
    %1256 = vmatprep.subr.mxu0 0.0
    %1257 = vmatpush1.msra.mxu0 0.0
    %1258 = vmatprep.subr.mxu0 0.0
    %1259 = vmatpush1.msra.mxu0 0.0
    %1260 = vmatprep.mubr.f32.mxu0 0.0
    %1261 = vmatmul.mubr.f32.gmra.mrb[0].mxu0 %v1194
    %v1262 = vpop.f32.mrb[0].mxu0
    %v1263 = vadd.f32 0.0, %v1262
    %v1264 = vpop.f32.mrb[0].mxu0
    %1265 = vdwg.mxu0
    %1266 = vst [vmem:[#allocation5] sm:$0x3] %v1263
    // Predicated region
    $region18: #{tpu_custom_call.1} parent=1 // pred_check
      _
    $region19: #{tpu_custom_call.1} parent=1 // pred_check_branch
      %1268 = sbr.rel (0) target = $region21
    $region20: #{tpu_custom_call.1} parent=1 // pred_region
      %s1270 = ssub.s32 32, 32
      %1271 = vsyncadd [#allocation4], %s1270
      %s1273 = sshll.u32 [#allocation5], 4
      %s1274 = int_to_ptr.vmem [resolvable:$true] %s1273
      %1276 = dma.vmem_to_hbm [thread:$0]  %s1274, 32, %s3, [#allocation4]
    $region21: #{tpu_custom_call.1} parent=1 // pred_fallthru
      _
    // Predicated region
    $region22: #{tpu_custom_call.1} parent=1 // pred_check
      _
    $region23: #{tpu_custom_call.1} parent=1 // pred_check_branch
      %1278 = sbr.rel (0) target = $region25
    $region24: #{tpu_custom_call.1} parent=1 // pred_region
      %1279 = dma.done [#allocation4], 32
    $region25: #{tpu_custom_call.1} parent=1 // pred_fallthru
      _
    %1280 = vsyncpa [#allocation3], 1
    %1281 = vsyncpa [#allocation4], 1

</llo_original>
